<compile_context>
chip_gen: v6e
topology: v6e:2x2x1
jax: 0.10.0
libtpu: 0.0.40
codegen_flags: <defaults>
</compile_context>

<pallas_src>
import functools
import math

import jax
import jax.numpy as jnp
from jax.experimental import pallas as pl
from jax.experimental.pallas import tpu as pltpu


NUM_TOKENS = 4          # sequence length fixed by the module (embed_dim * 4)
LANE = 128
TILE_B_MAX = 1024       # rows per grid step (multiple of 256 for v6e/v7x MXU)


def _round_up(x, m):
    return (x + m - 1) // m * m


def fused_mlp_kernel(tok_ref, tab_ref, b1_ref, w2_ref, b2_ref, o_ref):
    """One batch tile of the fused forward pass.

    tok_ref: (TB, 4) int32          tab_ref: (4, Vp, H) bf16   (folded emb@W1)
    b1_ref:  (1, H)  f32            w2_ref:  (H, Vp)   bf16
    b2_ref:  (1, Vp) f32            o_ref:   (TB, Vp)  f32
    """
    toks = tok_ref[...]                                    # (TB, 4) int32
    tb = toks.shape[0]
    vp = tab_ref.shape[1]                                  # padded vocab (256)
    h_dim = tab_ref.shape[2]                               # hidden (128)

    col = jax.lax.broadcasted_iota(jnp.int32, (tb, vp), 1)
    h = jnp.zeros((tb, h_dim), jnp.float32)
    for t in range(NUM_TOKENS):                            # static unroll
        # Exact gather of table row tok[:, t] via a bf16 one-hot MXU matmul.
        onehot = (col == toks[:, t:t + 1]).astype(tab_ref.dtype)   # (TB, Vp)
        h = h + jnp.dot(onehot, tab_ref[t],
                        preferred_element_type=jnp.float32)

    h = jnp.maximum(h + b1_ref[...], 0.0)                  # bias + ReLU in f32

    out = jnp.dot(h.astype(w2_ref.dtype), w2_ref[...],
                  preferred_element_type=jnp.float32) + b2_ref[...]
    o_ref[...] = out                                       # lane-dense f32 store


def fold_params(params):
    """One-time weight folding: per-position lookup tables + vocab padding."""
    emb, w1, b1, w2, b2 = (params["emb"], params["w1"], params["b1"],
                           params["w2"], params["b2"])
    vocab, embed_dim = emb.shape
    hidden = w1.shape[1]
    vp = _round_up(vocab, LANE)                            # 203 -> 256

    w1_t = w1.reshape(NUM_TOKENS, embed_dim, hidden)       # (4, 65, 128)
    tables = jnp.einsum("ve,teh->tvh", emb, w1_t)          # (4, 203, 128) f32
    tables = jnp.pad(tables, ((0, 0), (0, vp - vocab), (0, 0)))

    return {
        "tables": tables.astype(jnp.bfloat16),                               # (4, Vp, H)
        "b1": b1.astype(jnp.float32),                                        # (1, H)
        "w2": jnp.pad(w2, ((0, 0), (0, vp - vocab))).astype(jnp.bfloat16),   # (H, Vp)
        "b2": jnp.pad(b2, ((0, 0), (0, vp - vocab))).astype(jnp.float32),    # (1, Vp)
    }


@functools.partial(jax.jit, static_argnames=("vocab",))
def base_model_forward(tokens, folded, *, vocab):
    """tokens: (B, 4) int -> logits (B, vocab) float32."""
    tables, b1, w2, b2 = folded["tables"], folded["b1"], folded["w2"], folded["b2"]
    B = tokens.shape[0]
    vp = tables.shape[1]
    hidden = tables.shape[2]

    # Batch tiling: multiple of 256 (MXU fill on v6e/v7x), capped so the tile
    # stays far under v7x's scoped-VMEM limit; pad B up to a tile multiple.
    tile_b = min(TILE_B_MAX, _round_up(B, 256))
    padded_b = _round_up(B, tile_b)
    toks = jnp.pad(tokens.astype(jnp.int32), ((0, padded_b - B), (0, 0)))

    logits_padded = pl.pallas_call(
        fused_mlp_kernel,
        out_shape=jax.ShapeDtypeStruct((padded_b, vp), jnp.float32),
        grid=(padded_b // tile_b,),
        in_specs=[
            pl.BlockSpec((tile_b, NUM_TOKENS), lambda i: (i, 0)),     # tokens tile
            pl.BlockSpec((NUM_TOKENS, vp, hidden), lambda i: (0, 0, 0)),  # tables (resident)
            pl.BlockSpec((1, hidden), lambda i: (0, 0)),              # b1 (resident)
            pl.BlockSpec((hidden, vp), lambda i: (0, 0)),             # w2 (resident)
            pl.BlockSpec((1, vp), lambda i: (0, 0)),                  # b2 (resident)
        ],
        out_specs=pl.BlockSpec((tile_b, vp), lambda i: (i, 0)),
        compiler_params=pltpu.CompilerParams(
            dimension_semantics=("parallel",),                        # megacore on v7x
        ),
    )(toks, tables, b1, w2, b2)

    return logits_padded[:B, :vocab]


def init_params(key, max_int=100, multiplier=8):
    vocab_size = 2 * max_int + 3                                   # 203
    info_per_token = multiplier * math.ceil(math.log2(vocab_size)) # 64
    embed_dim = info_per_token + 1                                 # 65
    hidden_dim = info_per_token * 2                                # 128
    in_dim = embed_dim * NUM_TOKENS                                # 260

    k_emb, k_w1, k_b1, k_w2, k_b2 = jax.random.split(key, 5)

    # Deterministic synthetic init (mirrors nn.Embedding ~N(0,1) and
    # nn.Linear uniform(-1/sqrt(fan_in), 1/sqrt(fan_in))).
    emb = jax.random.normal(k_emb, (vocab_size, embed_dim), dtype=jnp.float32)
    lim1 = 1.0 / math.sqrt(in_dim)
    w1 = jax.random.uniform(k_w1, (in_dim, hidden_dim), jnp.float32, -lim1, lim1)
    b1 = jax.random.uniform(k_b1, (1, hidden_dim), jnp.float32, -lim1, lim1)
    lim2 = 1.0 / math.sqrt(hidden_dim)
    w2 = jax.random.uniform(k_w2, (hidden_dim, vocab_size), jnp.float32, -lim2, lim2)
    b2 = jax.random.uniform(k_b2, (1, vocab_size), jnp.float32, -lim2, lim2)

    return {"emb": emb, "w1": w1, "b1": b1, "w2": w2, "b2": b2}, vocab_size


if __name__ == "__main__":
    key = jax.random.PRNGKey(0)
    params, vocab_size = init_params(key, max_int=100, multiplier=8)
    folded = fold_params(params)

    # tokens: batch of 2 arithmetic expressions, 4 tokens each.
    tok_key = jax.random.fold_in(key, 123)
    tokens = jax.random.randint(tok_key, (2, NUM_TOKENS), 0, vocab_size, dtype=jnp.int32)

    logits = base_model_forward(tokens, folded, vocab=vocab_size)
    jax.block_until_ready(logits)

    # Pure-JAX f32 reference of the original PyTorch forward.
    emb_rows = jnp.take(params["emb"], tokens, axis=0).reshape(tokens.shape[0], -1)
    ref = jnp.maximum(emb_rows @ params["w1"] + params["b1"], 0.0) @ params["w2"] + params["b2"]

    assert logits.shape == (2, vocab_size)
    # bf16 MXU operands (tables / w2 / h) -> compare at bf16-appropriate tolerance.
    err = float(jnp.max(jnp.abs(logits - ref)))
    assert jnp.allclose(logits, ref, atol=3e-2, rtol=3e-2), f"max abs err {err}"

    print("KERNEL_OK")
</pallas_src>

<mosaic_0001>
module attributes {stable_mosaic.version = 11 : i64} {
  func.func @fused_mlp_kernel(%arg0: i32, %arg1: memref<256x4xi32, #tpu.memory_space<vmem>>, %arg2: memref<4x256x128xbf16, #tpu.memory_space<vmem>>, %arg3: memref<1x128xf32, #tpu.memory_space<vmem>>, %arg4: memref<128x256xbf16, #tpu.memory_space<vmem>>, %arg5: memref<1x256xf32, #tpu.memory_space<vmem>>, %arg6: memref<256x256xf32, #tpu.memory_space<vmem>>) attributes {dimension_semantics = [#tpu.dimension_semantics<parallel>], iteration_bounds = array<i64: 1>, scalar_prefetch = 0 : i64, scratch_operands = 0 : i64, tpu.core_type = #tpu.core_type<tc>, window_params = [{transform_indices = @transform_0, window_bounds = array<i64: 256, 4>}, {pipeline_mode = #tpu.pipeline_mode<synchronous>, transform_indices = @transform_1, window_bounds = array<i64: 4, 256, 128>}, {pipeline_mode = #tpu.pipeline_mode<synchronous>, transform_indices = @transform_2, window_bounds = array<i64: 1, 128>}, {pipeline_mode = #tpu.pipeline_mode<synchronous>, transform_indices = @transform_3, window_bounds = array<i64: 128, 256>}, {pipeline_mode = #tpu.pipeline_mode<synchronous>, transform_indices = @transform_4, window_bounds = array<i64: 1, 256>}, {transform_indices = @transform_5, window_bounds = array<i64: 256, 256>}]} {
    %c0 = arith.constant 0 : index
    %c0_0 = arith.constant 0 : index
    %0 = vector.load %arg1[%c0, %c0_0] : memref<256x4xi32, #tpu.memory_space<vmem>>, vector<256x4xi32>
    %1 = tpu.iota {dimensions = array<i32: 1>} : vector<256x256xi32>
    %cst = arith.constant 0.000000e+00 : f32
    %2 = vector.broadcast %cst : f32 to vector<256x128xf32>
    %3 = vector.extract_strided_slice %0 {offsets = [0, 0], sizes = [256, 1], strides = [1, 1]} : vector<256x4xi32> to vector<256x1xi32>
    %4 = vector.broadcast %3 : vector<256x1xi32> to vector<256x256xi32>
    %5 = arith.cmpi eq, %1, %4 : vector<256x256xi32>
    %6 = arith.extui %5 : vector<256x256xi1> to vector<256x256xi32>
    %7 = arith.sitofp %6 : vector<256x256xi32> to vector<256x256xf32>
    %8 = arith.truncf %7 : vector<256x256xf32> to vector<256x256xbf16>
    %c0_1 = arith.constant 0 : index
    %c0_2 = arith.constant 0 : index
    %c0_3 = arith.constant 0 : index
    %9 = vector.load %arg2[%c0_1, %c0_2, %c0_3] : memref<4x256x128xbf16, #tpu.memory_space<vmem>>, vector<1x256x128xbf16>
    %10 = vector.shape_cast %9 : vector<1x256x128xbf16> to vector<256x128xbf16>
    %cst_4 = arith.constant dense<0.000000e+00> : vector<256x128xf32>
    %11 = tpu.matmul %8, %10, %cst_4 {dimension_numbers = #tpu.dot_dimension_numbers<[1], [0], [0], [1], [0, 0, 1, 1], [], []>} : vector<256x256xbf16>, vector<256x128xbf16>, vector<256x128xf32> -> vector<256x128xf32>
    %12 = arith.addf %2, %11 : vector<256x128xf32>
    %13 = vector.extract_strided_slice %0 {offsets = [0, 1], sizes = [256, 1], strides = [1, 1]} : vector<256x4xi32> to vector<256x1xi32>
    %14 = vector.broadcast %13 : vector<256x1xi32> to vector<256x256xi32>
    %15 = arith.cmpi eq, %1, %14 : vector<256x256xi32>
    %16 = arith.extui %15 : vector<256x256xi1> to vector<256x256xi32>
    %17 = arith.sitofp %16 : vector<256x256xi32> to vector<256x256xf32>
    %18 = arith.truncf %17 : vector<256x256xf32> to vector<256x256xbf16>
    %c1 = arith.constant 1 : index
    %c0_5 = arith.constant 0 : index
    %c0_6 = arith.constant 0 : index
    %19 = vector.load %arg2[%c1, %c0_5, %c0_6] : memref<4x256x128xbf16, #tpu.memory_space<vmem>>, vector<1x256x128xbf16>
    %20 = vector.shape_cast %19 : vector<1x256x128xbf16> to vector<256x128xbf16>
    %cst_7 = arith.constant dense<0.000000e+00> : vector<256x128xf32>
    %21 = tpu.matmul %18, %20, %cst_7 {dimension_numbers = #tpu.dot_dimension_numbers<[1], [0], [0], [1], [0, 0, 1, 1], [], []>} : vector<256x256xbf16>, vector<256x128xbf16>, vector<256x128xf32> -> vector<256x128xf32>
    %22 = arith.addf %12, %21 : vector<256x128xf32>
    %23 = vector.extract_strided_slice %0 {offsets = [0, 2], sizes = [256, 1], strides = [1, 1]} : vector<256x4xi32> to vector<256x1xi32>
    %24 = vector.broadcast %23 : vector<256x1xi32> to vector<256x256xi32>
    %25 = arith.cmpi eq, %1, %24 : vector<256x256xi32>
    %26 = arith.extui %25 : vector<256x256xi1> to vector<256x256xi32>
    %27 = arith.sitofp %26 : vector<256x256xi32> to vector<256x256xf32>
    %28 = arith.truncf %27 : vector<256x256xf32> to vector<256x256xbf16>
    %c2 = arith.constant 2 : index
    %c0_8 = arith.constant 0 : index
    %c0_9 = arith.constant 0 : index
    %29 = vector.load %arg2[%c2, %c0_8, %c0_9] : memref<4x256x128xbf16, #tpu.memory_space<vmem>>, vector<1x256x128xbf16>
    %30 = vector.shape_cast %29 : vector<1x256x128xbf16> to vector<256x128xbf16>
    %cst_10 = arith.constant dense<0.000000e+00> : vector<256x128xf32>
    %31 = tpu.matmul %28, %30, %cst_10 {dimension_numbers = #tpu.dot_dimension_numbers<[1], [0], [0], [1], [0, 0, 1, 1], [], []>} : vector<256x256xbf16>, vector<256x128xbf16>, vector<256x128xf32> -> vector<256x128xf32>
    %32 = arith.addf %22, %31 : vector<256x128xf32>
    %33 = vector.extract_strided_slice %0 {offsets = [0, 3], sizes = [256, 1], strides = [1, 1]} : vector<256x4xi32> to vector<256x1xi32>
    %34 = vector.broadcast %33 : vector<256x1xi32> to vector<256x256xi32>
    %35 = arith.cmpi eq, %1, %34 : vector<256x256xi32>
    %36 = arith.extui %35 : vector<256x256xi1> to vector<256x256xi32>
    %37 = arith.sitofp %36 : vector<256x256xi32> to vector<256x256xf32>
    %38 = arith.truncf %37 : vector<256x256xf32> to vector<256x256xbf16>
    %c3 = arith.constant 3 : index
    %c0_11 = arith.constant 0 : index
    %c0_12 = arith.constant 0 : index
    %39 = vector.load %arg2[%c3, %c0_11, %c0_12] : memref<4x256x128xbf16, #tpu.memory_space<vmem>>, vector<1x256x128xbf16>
    %40 = vector.shape_cast %39 : vector<1x256x128xbf16> to vector<256x128xbf16>
    %cst_13 = arith.constant dense<0.000000e+00> : vector<256x128xf32>
    %41 = tpu.matmul %38, %40, %cst_13 {dimension_numbers = #tpu.dot_dimension_numbers<[1], [0], [0], [1], [0, 0, 1, 1], [], []>} : vector<256x256xbf16>, vector<256x128xbf16>, vector<256x128xf32> -> vector<256x128xf32>
    %42 = arith.addf %32, %41 : vector<256x128xf32>
    %c0_14 = arith.constant 0 : index
    %c0_15 = arith.constant 0 : index
    %43 = vector.load %arg3[%c0_14, %c0_15] : memref<1x128xf32, #tpu.memory_space<vmem>>, vector<1x128xf32>
    %44 = vector.broadcast %43 : vector<1x128xf32> to vector<256x128xf32>
    %45 = arith.addf %42, %44 : vector<256x128xf32>
    %cst_16 = arith.constant 0.000000e+00 : f32
    %46 = vector.broadcast %cst_16 : f32 to vector<256x128xf32>
    %47 = arith.maximumf %45, %46 : vector<256x128xf32>
    %48 = arith.truncf %47 : vector<256x128xf32> to vector<256x128xbf16>
    %c0_17 = arith.constant 0 : index
    %c0_18 = arith.constant 0 : index
    %49 = vector.load %arg4[%c0_17, %c0_18] : memref<128x256xbf16, #tpu.memory_space<vmem>>, vector<128x256xbf16>
    %cst_19 = arith.constant dense<0.000000e+00> : vector<256x256xf32>
    %50 = tpu.matmul %48, %49, %cst_19 {dimension_numbers = #tpu.dot_dimension_numbers<[1], [0], [0], [1], [0, 0, 1, 1], [], []>} : vector<256x128xbf16>, vector<128x256xbf16>, vector<256x256xf32> -> vector<256x256xf32>
    %c0_20 = arith.constant 0 : index
    %c0_21 = arith.constant 0 : index
    %51 = vector.load %arg5[%c0_20, %c0_21] : memref<1x256xf32, #tpu.memory_space<vmem>>, vector<1x256xf32>
    %52 = vector.broadcast %51 : vector<1x256xf32> to vector<256x256xf32>
    %53 = arith.addf %50, %52 : vector<256x256xf32>
    %c0_22 = arith.constant 0 : index
    %c0_23 = arith.constant 0 : index
    %54 = vector.load %arg6[%c0_22, %c0_23] : memref<256x256xf32, #tpu.memory_space<vmem>>, vector<256x256xf32>
    tpu.vector_store %arg6[%c0_22, %c0_23], %53 {strides = array<i32>} : memref<256x256xf32, #tpu.memory_space<vmem>>, vector<256x256xf32>,
    return
  }
  func.func @transform_0(%arg0: i32) -> (i32, i32) {
    %c0_i32 = arith.constant 0 : i32
    %c0_i32_0 = arith.constant 0 : i32
    return %arg0, %c0_i32 : i32, i32
  }
  func.func @transform_1(%arg0: i32) -> (i32, i32, i32) {
    %c0_i32 = arith.constant 0 : i32
    %c0_i32_0 = arith.constant 0 : i32
    %c0_i32_1 = arith.constant 0 : i32
    %c0_i32_2 = arith.constant 0 : i32
    return %c0_i32, %c0_i32_0, %c0_i32_1 : i32, i32, i32
  }
  func.func @transform_2(%arg0: i32) -> (i32, i32) {
    %c0_i32 = arith.constant 0 : i32
    %c0_i32_0 = arith.constant 0 : i32
    %c0_i32_1 = arith.constant 0 : i32
    return %c0_i32, %c0_i32_0 : i32, i32
  }
  func.func @transform_3(%arg0: i32) -> (i32, i32) {
    %c0_i32 = arith.constant 0 : i32
    %c0_i32_0 = arith.constant 0 : i32
    %c0_i32_1 = arith.constant 0 : i32
    return %c0_i32, %c0_i32_0 : i32, i32
  }
  func.func @transform_4(%arg0: i32) -> (i32, i32) {
    %c0_i32 = arith.constant 0 : i32
    %c0_i32_0 = arith.constant 0 : i32
    %c0_i32_1 = arith.constant 0 : i32
    return %c0_i32, %c0_i32_0 : i32, i32
  }
  func.func @transform_5(%arg0: i32) -> (i32, i32) {
    %c0_i32 = arith.constant 0 : i32
    %c0_i32_0 = arith.constant 0 : i32
    return %arg0, %c0_i32 : i32, i32
  }
}

</mosaic_0001>

<llo_original>
// kernel: base_model_forward.1
$region0: #{base_model_forward.1}
  #allocation0 [shape = 'u32[]', space=smem, size = 0x4, offset = 0x4, fixed_abs, tag = 'smem constant byte address 0x4 - core index']
  #allocation1 [shape = 'u32[144,128]{1,0:T(1,128)}', space=vmem, size = 0x12000, scoped, tag = 'internal scratch']
  %s0 = inlined_call_operand.vmem [shape: s32[256,4], index: 0, kind: input, shape index: {}]
  %s1 = inlined_call_operand.hbm [shape: bf16[4,256,128], index: 1, kind: input, shape index: {}]
  %s2 = inlined_call_operand.vmem [shape: f32[1,128], index: 2, kind: input, shape index: {}]
  %s3 = inlined_call_operand.vmem [shape: bf16[128,256], index: 3, kind: input, shape index: {}]
  %s4 = inlined_call_operand.vmem [shape: f32[1,256], index: 4, kind: input, shape index: {}]
  %s5 = inlined_call_operand.vmem [shape: f32[256,256], index: 5, kind: output, shape index: {}]
  %s6 = sld [smem:[#allocation0]]
  $region34: #{base_model_forward.1} parent=0
    _
  %s8 = ssub.s32 1, %s6
  %s9 = scalar_select 0, %s8, %s6
  $region1: #{base_model_forward.1} parent=0
    #allocation2 [shape = 'u8[262144]{0}', space=vmem, size = 0x40000, scoped, tag = 'input window, operand 1, single buffered']
    #allocation3 [shape = 's32[1]{0}', space=sflag, size = 0x4, scoped, tag = 'scoped memory for base_model_forward.1']
    %10 = vsyncpa [#allocation3], 0
    // Predicated region
    $region2: #{base_model_forward.1} parent=1 // pred_check
      _
    $region3: #{base_model_forward.1} parent=1 // pred_check_branch
      %12 = sbr.rel (0) target = $region5
    $region4: #{base_model_forward.1} parent=1 // pred_region
      _
    $region5: #{base_model_forward.1} parent=1 // pred_fallthru
      _
    // Predicated region
    $region6: #{base_model_forward.1} parent=1 // pred_check
      _
    $region7: #{base_model_forward.1} parent=1 // pred_check_branch
      %14 = sbr.rel (0) target = $region9
    $region8: #{base_model_forward.1} parent=1 // pred_region
      %s16 = ssub.s32 8192, 8192
      %17 = vsyncadd [#allocation3], %s16
      %s18 = sshll.u32 [#allocation2], 4
      %s19 = int_to_ptr.vmem [resolvable:$true] %s18
      %24 = dma.hbm_to_vmem [thread:$0]  %s1, 8192, %s19, [#allocation3], 64, 64, 4
    $region9: #{base_model_forward.1} parent=1 // pred_fallthru
      _
    // Predicated region
    $region10: #{base_model_forward.1} parent=1 // pred_check
      _
    $region11: #{base_model_forward.1} parent=1 // pred_check_branch
      %26 = sbr.rel (0) target = $region13
    $region12: #{base_model_forward.1} parent=1 // pred_region
      _
    $region13: #{base_model_forward.1} parent=1 // pred_fallthru
      _
    // Predicated region
    $region14: #{base_model_forward.1} parent=1 // pred_check
      _
    $region15: #{base_model_forward.1} parent=1 // pred_check_branch
      %28 = sbr.rel (0) target = $region17
    $region16: #{base_model_forward.1} parent=1 // pred_region
      _
    $region17: #{base_model_forward.1} parent=1 // pred_fallthru
      _
    // Predicated region
    $region18: #{base_model_forward.1} parent=1 // pred_check
      _
    $region19: #{base_model_forward.1} parent=1 // pred_check_branch
      %30 = sbr.rel (0) target = $region21
    $region20: #{base_model_forward.1} parent=1 // pred_region
      _
    $region21: #{base_model_forward.1} parent=1 // pred_fallthru
      _
    // Predicated region
    $region22: #{base_model_forward.1} parent=1 // pred_check
      _
    $region23: #{base_model_forward.1} parent=1 // pred_check_branch
      %32 = sbr.rel (0) target = $region25
    $region24: #{base_model_forward.1} parent=1 // pred_region
      %33 = dma.done [#allocation3], 8192
    $region25: #{base_model_forward.1} parent=1 // pred_fallthru
      _
    %v35 = vld [vmem:[%s0] sm:$0xff]
    %v36 = vld [vmem:[%s0 + $0x8] sm:$0xff]
    %v37 = vld [vmem:[%s0 + $0x10] sm:$0xff]
    %v38 = vld [vmem:[%s0 + $0x18] sm:$0xff]
    %v39 = vld [vmem:[%s0 + $0x20] sm:$0xff]
    %v40 = vld [vmem:[%s0 + $0x28] sm:$0xff]
    %v41 = vld [vmem:[%s0 + $0x30] sm:$0xff]
    %v42 = vld [vmem:[%s0 + $0x38] sm:$0xff]
    %v43 = vld [vmem:[%s0 + $0x40] sm:$0xff]
    %v44 = vld [vmem:[%s0 + $0x48] sm:$0xff]
    %v45 = vld [vmem:[%s0 + $0x50] sm:$0xff]
    %v46 = vld [vmem:[%s0 + $0x58] sm:$0xff]
    %v47 = vld [vmem:[%s0 + $0x60] sm:$0xff]
    %v48 = vld [vmem:[%s0 + $0x68] sm:$0xff]
    %v49 = vld [vmem:[%s0 + $0x70] sm:$0xff]
    %v50 = vld [vmem:[%s0 + $0x78] sm:$0xff]
    %v51 = vld [vmem:[%s0 + $0x80] sm:$0xff]
    %v52 = vld [vmem:[%s0 + $0x88] sm:$0xff]
    %v53 = vld [vmem:[%s0 + $0x90] sm:$0xff]
    %v54 = vld [vmem:[%s0 + $0x98] sm:$0xff]
    %v55 = vld [vmem:[%s0 + $0xa0] sm:$0xff]
    %v56 = vld [vmem:[%s0 + $0xa8] sm:$0xff]
    %v57 = vld [vmem:[%s0 + $0xb0] sm:$0xff]
    %v58 = vld [vmem:[%s0 + $0xb8] sm:$0xff]
    %v59 = vld [vmem:[%s0 + $0xc0] sm:$0xff]
    %v60 = vld [vmem:[%s0 + $0xc8] sm:$0xff]
    %v61 = vld [vmem:[%s0 + $0xd0] sm:$0xff]
    %v62 = vld [vmem:[%s0 + $0xd8] sm:$0xff]
    %v63 = vld [vmem:[%s0 + $0xe0] sm:$0xff]
    %v64 = vld [vmem:[%s0 + $0xe8] sm:$0xff]
    %v65 = vld [vmem:[%s0 + $0xf0] sm:$0xff]
    %v66 = vld [vmem:[%s0 + $0xf8] sm:$0xff]
    %v67 = vlaneseq
    %v68 = vand.u32 %v67, 127
    %v69 = vadd.s32 %v68, 128
    %70 = vset.pattern.permute.xlu0 0
    %71 = vperm.xlu0 %70, %v35
    %v72 = vpop.permute.xlu0 %71
    %73 = vset.pattern.permute.xlu0 0
    %74 = vperm.xlu0 %73, %v36
    %v75 = vpop.permute.xlu0 %74
    %76 = vset.pattern.permute.xlu0 0
    %77 = vperm.xlu0 %76, %v37
    %v78 = vpop.permute.xlu0 %77
    %79 = vset.pattern.permute.xlu0 0
    %80 = vperm.xlu0 %79, %v38
    %v81 = vpop.permute.xlu0 %80
    %82 = vset.pattern.permute.xlu0 0
    %83 = vperm.xlu0 %82, %v39
    %v84 = vpop.permute.xlu0 %83
    %85 = vset.pattern.permute.xlu0 0
    %86 = vperm.xlu0 %85, %v40
    %v87 = vpop.permute.xlu0 %86
    %88 = vset.pattern.permute.xlu0 0
    %89 = vperm.xlu0 %88, %v41
    %v90 = vpop.permute.xlu0 %89
    %91 = vset.pattern.permute.xlu0 0
    %92 = vperm.xlu0 %91, %v42
    %v93 = vpop.permute.xlu0 %92
    %94 = vset.pattern.permute.xlu0 0
    %95 = vperm.xlu0 %94, %v43
    %v96 = vpop.permute.xlu0 %95
    %97 = vset.pattern.permute.xlu0 0
    %98 = vperm.xlu0 %97, %v44
    %v99 = vpop.permute.xlu0 %98
    %100 = vset.pattern.permute.xlu0 0
    %101 = vperm.xlu0 %100, %v45
    %v102 = vpop.permute.xlu0 %101
    %103 = vset.pattern.permute.xlu0 0
    %104 = vperm.xlu0 %103, %v46
    %v105 = vpop.permute.xlu0 %104
    %106 = vset.pattern.permute.xlu0 0
    %107 = vperm.xlu0 %106, %v47
    %v108 = vpop.permute.xlu0 %107
    %109 = vset.pattern.permute.xlu0 0
    %110 = vperm.xlu0 %109, %v48
    %v111 = vpop.permute.xlu0 %110
    %112 = vset.pattern.permute.xlu0 0
    %113 = vperm.xlu0 %112, %v49
    %v114 = vpop.permute.xlu0 %113
    %115 = vset.pattern.permute.xlu0 0
    %116 = vperm.xlu0 %115, %v50
    %v117 = vpop.permute.xlu0 %116
    %118 = vset.pattern.permute.xlu0 0
    %119 = vperm.xlu0 %118, %v51
    %v120 = vpop.permute.xlu0 %119
    %121 = vset.pattern.permute.xlu0 0
    %122 = vperm.xlu0 %121, %v52
    %v123 = vpop.permute.xlu0 %122
    %124 = vset.pattern.permute.xlu0 0
    %125 = vperm.xlu0 %124, %v53
    %v126 = vpop.permute.xlu0 %125
    %127 = vset.pattern.permute.xlu0 0
    %128 = vperm.xlu0 %127, %v54
    %v129 = vpop.permute.xlu0 %128
    %130 = vset.pattern.permute.xlu0 0
    %131 = vperm.xlu0 %130, %v55
    %v132 = vpop.permute.xlu0 %131
    %133 = vset.pattern.permute.xlu0 0
    %134 = vperm.xlu0 %133, %v56
    %v135 = vpop.permute.xlu0 %134
    %136 = vset.pattern.permute.xlu0 0
    %137 = vperm.xlu0 %136, %v57
    %v138 = vpop.permute.xlu0 %137
    %139 = vset.pattern.permute.xlu0 0
    %140 = vperm.xlu0 %139, %v58
    %v141 = vpop.permute.xlu0 %140
    %142 = vset.pattern.permute.xlu0 0
    %143 = vperm.xlu0 %142, %v59
    %v144 = vpop.permute.xlu0 %143
    %145 = vset.pattern.permute.xlu0 0
    %146 = vperm.xlu0 %145, %v60
    %v147 = vpop.permute.xlu0 %146
    %148 = vset.pattern.permute.xlu0 0
    %149 = vperm.xlu0 %148, %v61
    %v150 = vpop.permute.xlu0 %149
    %151 = vset.pattern.permute.xlu0 0
    %152 = vperm.xlu0 %151, %v62
    %v153 = vpop.permute.xlu0 %152
    %154 = vset.pattern.permute.xlu0 0
    %155 = vperm.xlu0 %154, %v63
    %v156 = vpop.permute.xlu0 %155
    %157 = vset.pattern.permute.xlu0 0
    %158 = vperm.xlu0 %157, %v64
    %v159 = vpop.permute.xlu0 %158
    %160 = vset.pattern.permute.xlu0 0
    %161 = vperm.xlu0 %160, %v65
    %v162 = vpop.permute.xlu0 %161
    %163 = vset.pattern.permute.xlu0 0
    %164 = vperm.xlu0 %163, %v66
    %v165 = vpop.permute.xlu0 %164
    %vm166 = vcmp.eq.s32.totalorder %v68, %v72
    %vm167 = vcmp.eq.s32.totalorder %v69, %v72
    %vm168 = vcmp.eq.s32.totalorder %v68, %v75
    %vm169 = vcmp.eq.s32.totalorder %v69, %v75
    %vm170 = vcmp.eq.s32.totalorder %v68, %v78
    %vm171 = vcmp.eq.s32.totalorder %v69, %v78
    %vm172 = vcmp.eq.s32.totalorder %v68, %v81
    %vm173 = vcmp.eq.s32.totalorder %v69, %v81
    %vm174 = vcmp.eq.s32.totalorder %v68, %v84
    %vm175 = vcmp.eq.s32.totalorder %v69, %v84
    %vm176 = vcmp.eq.s32.totalorder %v68, %v87
    %vm177 = vcmp.eq.s32.totalorder %v69, %v87
    %vm178 = vcmp.eq.s32.totalorder %v68, %v90
    %vm179 = vcmp.eq.s32.totalorder %v69, %v90
    %vm180 = vcmp.eq.s32.totalorder %v68, %v93
    %vm181 = vcmp.eq.s32.totalorder %v69, %v93
    %vm182 = vcmp.eq.s32.totalorder %v68, %v96
    %vm183 = vcmp.eq.s32.totalorder %v69, %v96
    %vm184 = vcmp.eq.s32.totalorder %v68, %v99
    %vm185 = vcmp.eq.s32.totalorder %v69, %v99
    %vm186 = vcmp.eq.s32.totalorder %v68, %v102
    %vm187 = vcmp.eq.s32.totalorder %v69, %v102
    %vm188 = vcmp.eq.s32.totalorder %v68, %v105
    %vm189 = vcmp.eq.s32.totalorder %v69, %v105
    %vm190 = vcmp.eq.s32.totalorder %v68, %v108
    %vm191 = vcmp.eq.s32.totalorder %v69, %v108
    %vm192 = vcmp.eq.s32.totalorder %v68, %v111
    %vm193 = vcmp.eq.s32.totalorder %v69, %v111
    %vm194 = vcmp.eq.s32.totalorder %v68, %v114
    %vm195 = vcmp.eq.s32.totalorder %v69, %v114
    %vm196 = vcmp.eq.s32.totalorder %v68, %v117
    %vm197 = vcmp.eq.s32.totalorder %v69, %v117
    %vm198 = vcmp.eq.s32.totalorder %v68, %v120
    %vm199 = vcmp.eq.s32.totalorder %v69, %v120
    %vm200 = vcmp.eq.s32.totalorder %v68, %v123
    %vm201 = vcmp.eq.s32.totalorder %v69, %v123
    %vm202 = vcmp.eq.s32.totalorder %v68, %v126
    %vm203 = vcmp.eq.s32.totalorder %v69, %v126
    %vm204 = vcmp.eq.s32.totalorder %v68, %v129
    %vm205 = vcmp.eq.s32.totalorder %v69, %v129
    %vm206 = vcmp.eq.s32.totalorder %v68, %v132
    %vm207 = vcmp.eq.s32.totalorder %v69, %v132
    %vm208 = vcmp.eq.s32.totalorder %v68, %v135
    %vm209 = vcmp.eq.s32.totalorder %v69, %v135
    %vm210 = vcmp.eq.s32.totalorder %v68, %v138
    %vm211 = vcmp.eq.s32.totalorder %v69, %v138
    %vm212 = vcmp.eq.s32.totalorder %v68, %v141
    %vm213 = vcmp.eq.s32.totalorder %v69, %v141
    %vm214 = vcmp.eq.s32.totalorder %v68, %v144
    %vm215 = vcmp.eq.s32.totalorder %v69, %v144
    %vm216 = vcmp.eq.s32.totalorder %v68, %v147
    %vm217 = vcmp.eq.s32.totalorder %v69, %v147
    %vm218 = vcmp.eq.s32.totalorder %v68, %v150
    %vm219 = vcmp.eq.s32.totalorder %v69, %v150
    %vm220 = vcmp.eq.s32.totalorder %v68, %v153
    %vm221 = vcmp.eq.s32.totalorder %v69, %v153
    %vm222 = vcmp.eq.s32.totalorder %v68, %v156
    %vm223 = vcmp.eq.s32.totalorder %v69, %v156
    %vm224 = vcmp.eq.s32.totalorder %v68, %v159
    %vm225 = vcmp.eq.s32.totalorder %v69, %v159
    %vm226 = vcmp.eq.s32.totalorder %v68, %v162
    %vm227 = vcmp.eq.s32.totalorder %v69, %v162
    %vm228 = vcmp.eq.s32.totalorder %v68, %v165
    %vm229 = vcmp.eq.s32.totalorder %v69, %v165
    %v230 = vsel %vm166, 1, 0
    %v231 = vsel %vm167, 1, 0
    %v232 = vsel %vm168, 1, 0
    %v233 = vsel %vm169, 1, 0
    %v234 = vsel %vm170, 1, 0
    %v235 = vsel %vm171, 1, 0
    %v236 = vsel %vm172, 1, 0
    %v237 = vsel %vm173, 1, 0
    %v238 = vsel %vm174, 1, 0
    %v239 = vsel %vm175, 1, 0
    %v240 = vsel %vm176, 1, 0
    %v241 = vsel %vm177, 1, 0
    %v242 = vsel %vm178, 1, 0
    %v243 = vsel %vm179, 1, 0
    %v244 = vsel %vm180, 1, 0
    %v245 = vsel %vm181, 1, 0
    %v246 = vsel %vm182, 1, 0
    %v247 = vsel %vm183, 1, 0
    %v248 = vsel %vm184, 1, 0
    %v249 = vsel %vm185, 1, 0
    %v250 = vsel %vm186, 1, 0
    %v251 = vsel %vm187, 1, 0
    %v252 = vsel %vm188, 1, 0
    %v253 = vsel %vm189, 1, 0
    %v254 = vsel %vm190, 1, 0
    %v255 = vsel %vm191, 1, 0
    %v256 = vsel %vm192, 1, 0
    %v257 = vsel %vm193, 1, 0
    %v258 = vsel %vm194, 1, 0
    %v259 = vsel %vm195, 1, 0
    %v260 = vsel %vm196, 1, 0
    %v261 = vsel %vm197, 1, 0
    %v262 = vsel %vm198, 1, 0
    %v263 = vsel %vm199, 1, 0
    %v264 = vsel %vm200, 1, 0
    %v265 = vsel %vm201, 1, 0
    %v266 = vsel %vm202, 1, 0
    %v267 = vsel %vm203, 1, 0
    %v268 = vsel %vm204, 1, 0
    %v269 = vsel %vm205, 1, 0
    %v270 = vsel %vm206, 1, 0
    %v271 = vsel %vm207, 1, 0
    %v272 = vsel %vm208, 1, 0
    %v273 = vsel %vm209, 1, 0
    %v274 = vsel %vm210, 1, 0
    %v275 = vsel %vm211, 1, 0
    %v276 = vsel %vm212, 1, 0
    %v277 = vsel %vm213, 1, 0
    %v278 = vsel %vm214, 1, 0
    %v279 = vsel %vm215, 1, 0
    %v280 = vsel %vm216, 1, 0
    %v281 = vsel %vm217, 1, 0
    %v282 = vsel %vm218, 1, 0
    %v283 = vsel %vm219, 1, 0
    %v284 = vsel %vm220, 1, 0
    %v285 = vsel %vm221, 1, 0
    %v286 = vsel %vm222, 1, 0
    %v287 = vsel %vm223, 1, 0
    %v288 = vsel %vm224, 1, 0
    %v289 = vsel %vm225, 1, 0
    %v290 = vsel %vm226, 1, 0
    %v291 = vsel %vm227, 1, 0
    %v292 = vsel %vm228, 1, 0
    %v293 = vsel %vm229, 1, 0
    %v294 = vcvt.s32.f32 %v230
    %v295 = vcvt.s32.f32 %v231
    %v296 = vcvt.s32.f32 %v232
    %v297 = vcvt.s32.f32 %v233
    %v298 = vcvt.s32.f32 %v234
    %v299 = vcvt.s32.f32 %v235
    %v300 = vcvt.s32.f32 %v236
    %v301 = vcvt.s32.f32 %v237
    %v302 = vcvt.s32.f32 %v238
    %v303 = vcvt.s32.f32 %v239
    %v304 = vcvt.s32.f32 %v240
    %v305 = vcvt.s32.f32 %v241
    %v306 = vcvt.s32.f32 %v242
    %v307 = vcvt.s32.f32 %v243
    %v308 = vcvt.s32.f32 %v244
    %v309 = vcvt.s32.f32 %v245
    %v310 = vcvt.s32.f32 %v246
    %v311 = vcvt.s32.f32 %v247
    %v312 = vcvt.s32.f32 %v248
    %v313 = vcvt.s32.f32 %v249
    %v314 = vcvt.s32.f32 %v250
    %v315 = vcvt.s32.f32 %v251
    %v316 = vcvt.s32.f32 %v252
    %v317 = vcvt.s32.f32 %v253
    %v318 = vcvt.s32.f32 %v254
    %v319 = vcvt.s32.f32 %v255
    %v320 = vcvt.s32.f32 %v256
    %v321 = vcvt.s32.f32 %v257
    %v322 = vcvt.s32.f32 %v258
    %v323 = vcvt.s32.f32 %v259
    %v324 = vcvt.s32.f32 %v260
    %v325 = vcvt.s32.f32 %v261
    %v326 = vcvt.s32.f32 %v262
    %v327 = vcvt.s32.f32 %v263
    %v328 = vcvt.s32.f32 %v264
    %v329 = vcvt.s32.f32 %v265
    %v330 = vcvt.s32.f32 %v266
    %v331 = vcvt.s32.f32 %v267
    %v332 = vcvt.s32.f32 %v268
    %v333 = vcvt.s32.f32 %v269
    %v334 = vcvt.s32.f32 %v270
    %v335 = vcvt.s32.f32 %v271
    %v336 = vcvt.s32.f32 %v272
    %v337 = vcvt.s32.f32 %v273
    %v338 = vcvt.s32.f32 %v274
    %v339 = vcvt.s32.f32 %v275
    %v340 = vcvt.s32.f32 %v276
    %v341 = vcvt.s32.f32 %v277
    %v342 = vcvt.s32.f32 %v278
    %v343 = vcvt.s32.f32 %v279
    %v344 = vcvt.s32.f32 %v280
    %v345 = vcvt.s32.f32 %v281
    %v346 = vcvt.s32.f32 %v282
    %v347 = vcvt.s32.f32 %v283
    %v348 = vcvt.s32.f32 %v284
    %v349 = vcvt.s32.f32 %v285
    %v350 = vcvt.s32.f32 %v286
    %v351 = vcvt.s32.f32 %v287
    %v352 = vcvt.s32.f32 %v288
    %v353 = vcvt.s32.f32 %v289
    %v354 = vcvt.s32.f32 %v290
    %v355 = vcvt.s32.f32 %v291
    %v356 = vcvt.s32.f32 %v292
    %v357 = vcvt.s32.f32 %v293
    %v358 = vpack.c.bf16 %v296, %v294
    %v359 = vpack.c.bf16 %v297, %v295
    %v360 = vpack.c.bf16 %v300, %v298
    %v361 = vpack.c.bf16 %v301, %v299
    %v362 = vpack.c.bf16 %v304, %v302
    %v363 = vpack.c.bf16 %v305, %v303
    %v364 = vpack.c.bf16 %v308, %v306
    %v365 = vpack.c.bf16 %v309, %v307
    %v366 = vpack.c.bf16 %v312, %v310
    %v367 = vpack.c.bf16 %v313, %v311
    %v368 = vpack.c.bf16 %v316, %v314
    %v369 = vpack.c.bf16 %v317, %v315
    %v370 = vpack.c.bf16 %v320, %v318
    %v371 = vpack.c.bf16 %v321, %v319
    %v372 = vpack.c.bf16 %v324, %v322
    %v373 = vpack.c.bf16 %v325, %v323
    %v374 = vpack.c.bf16 %v328, %v326
    %v375 = vpack.c.bf16 %v329, %v327
    %v376 = vpack.c.bf16 %v332, %v330
    %v377 = vpack.c.bf16 %v333, %v331
    %v378 = vpack.c.bf16 %v336, %v334
    %v379 = vpack.c.bf16 %v337, %v335
    %v380 = vpack.c.bf16 %v340, %v338
    %v381 = vpack.c.bf16 %v341, %v339
    %v382 = vpack.c.bf16 %v344, %v342
    %v383 = vpack.c.bf16 %v345, %v343
    %v384 = vpack.c.bf16 %v348, %v346
    %v385 = vpack.c.bf16 %v349, %v347
    %v386 = vpack.c.bf16 %v352, %v350
    %v387 = vpack.c.bf16 %v353, %v351
    %v388 = vpack.c.bf16 %v356, %v354
    %v389 = vpack.c.bf16 %v357, %v355
    %v390 = vld [vmem:[#allocation2] sm:$0xf]
    %v391 = vld [vmem:[#allocation2 + $0x4] sm:$0xf]
    %v392 = vld [vmem:[#allocation2 + $0x8] sm:$0xf]
    %v393 = vld [vmem:[#allocation2 + $0xc] sm:$0xf]
    %v394 = vld [vmem:[#allocation2 + $0x10] sm:$0xf]
    %v395 = vld [vmem:[#allocation2 + $0x14] sm:$0xf]
    %v396 = vld [vmem:[#allocation2 + $0x18] sm:$0xf]
    %v397 = vld [vmem:[#allocation2 + $0x1c] sm:$0xf]
    %v398 = vld [vmem:[#allocation2 + $0x20] sm:$0xf]
    %v399 = vld [vmem:[#allocation2 + $0x24] sm:$0xf]
    %v400 = vld [vmem:[#allocation2 + $0x28] sm:$0xf]
    %v401 = vld [vmem:[#allocation2 + $0x2c] sm:$0xf]
    %v402 = vld [vmem:[#allocation2 + $0x30] sm:$0xf]
    %v403 = vld [vmem:[#allocation2 + $0x34] sm:$0xf]
    %v404 = vld [vmem:[#allocation2 + $0x38] sm:$0xf]
    %v405 = vld [vmem:[#allocation2 + $0x3c] sm:$0xf]
    %v406 = vld [vmem:[#allocation2 + $0x40] sm:$0xf]
    %v407 = vld [vmem:[#allocation2 + $0x44] sm:$0xf]
    %v408 = vld [vmem:[#allocation2 + $0x48] sm:$0xf]
    %v409 = vld [vmem:[#allocation2 + $0x4c] sm:$0xf]
    %v410 = vld [vmem:[#allocation2 + $0x50] sm:$0xf]
    %v411 = vld [vmem:[#allocation2 + $0x54] sm:$0xf]
    %v412 = vld [vmem:[#allocation2 + $0x58] sm:$0xf]
    %v413 = vld [vmem:[#allocation2 + $0x5c] sm:$0xf]
    %v414 = vld [vmem:[#allocation2 + $0x60] sm:$0xf]
    %v415 = vld [vmem:[#allocation2 + $0x64] sm:$0xf]
    %v416 = vld [vmem:[#allocation2 + $0x68] sm:$0xf]
    %v417 = vld [vmem:[#allocation2 + $0x6c] sm:$0xf]
    %v418 = vld [vmem:[#allocation2 + $0x70] sm:$0xf]
    %v419 = vld [vmem:[#allocation2 + $0x74] sm:$0xf]
    %v420 = vld [vmem:[#allocation2 + $0x78] sm:$0xf]
    %v421 = vld [vmem:[#allocation2 + $0x7c] sm:$0xf]
    %422 = vset.pattern.permute.xlu0 1
    %423 = vperm.xlu0 %422, %v35
    %v424 = vpop.permute.xlu0 %423
    %425 = vset.pattern.permute.xlu0 1
    %426 = vperm.xlu0 %425, %v36
    %v427 = vpop.permute.xlu0 %426
    %428 = vset.pattern.permute.xlu0 1
    %429 = vperm.xlu0 %428, %v37
    %v430 = vpop.permute.xlu0 %429
    %431 = vset.pattern.permute.xlu0 1
    %432 = vperm.xlu0 %431, %v38
    %v433 = vpop.permute.xlu0 %432
    %434 = vset.pattern.permute.xlu0 1
    %435 = vperm.xlu0 %434, %v39
    %v436 = vpop.permute.xlu0 %435
    %437 = vset.pattern.permute.xlu0 1
    %438 = vperm.xlu0 %437, %v40
    %v439 = vpop.permute.xlu0 %438
    %440 = vset.pattern.permute.xlu0 1
    %441 = vperm.xlu0 %440, %v41
    %v442 = vpop.permute.xlu0 %441
    %443 = vset.pattern.permute.xlu0 1
    %444 = vperm.xlu0 %443, %v42
    %v445 = vpop.permute.xlu0 %444
    %446 = vset.pattern.permute.xlu0 1
    %447 = vperm.xlu0 %446, %v43
    %v448 = vpop.permute.xlu0 %447
    %449 = vset.pattern.permute.xlu0 1
    %450 = vperm.xlu0 %449, %v44
    %v451 = vpop.permute.xlu0 %450
    %452 = vset.pattern.permute.xlu0 1
    %453 = vperm.xlu0 %452, %v45
    %v454 = vpop.permute.xlu0 %453
    %455 = vset.pattern.permute.xlu0 1
    %456 = vperm.xlu0 %455, %v46
    %v457 = vpop.permute.xlu0 %456
    %458 = vset.pattern.permute.xlu0 1
    %459 = vperm.xlu0 %458, %v47
    %v460 = vpop.permute.xlu0 %459
    %461 = vset.pattern.permute.xlu0 1
    %462 = vperm.xlu0 %461, %v48
    %v463 = vpop.permute.xlu0 %462
    %464 = vset.pattern.permute.xlu0 1
    %465 = vperm.xlu0 %464, %v49
    %v466 = vpop.permute.xlu0 %465
    %467 = vset.pattern.permute.xlu0 1
    %468 = vperm.xlu0 %467, %v50
    %v469 = vpop.permute.xlu0 %468
    %470 = vset.pattern.permute.xlu0 1
    %471 = vperm.xlu0 %470, %v51
    %v472 = vpop.permute.xlu0 %471
    %473 = vset.pattern.permute.xlu0 1
    %474 = vperm.xlu0 %473, %v52
    %v475 = vpop.permute.xlu0 %474
    %476 = vset.pattern.permute.xlu0 1
    %477 = vperm.xlu0 %476, %v53
    %v478 = vpop.permute.xlu0 %477
    %479 = vset.pattern.permute.xlu0 1
    %480 = vperm.xlu0 %479, %v54
    %v481 = vpop.permute.xlu0 %480
    %482 = vset.pattern.permute.xlu0 1
    %483 = vperm.xlu0 %482, %v55
    %v484 = vpop.permute.xlu0 %483
    %485 = vset.pattern.permute.xlu0 1
    %486 = vperm.xlu0 %485, %v56
    %v487 = vpop.permute.xlu0 %486
    %488 = vset.pattern.permute.xlu0 1
    %489 = vperm.xlu0 %488, %v57
    %v490 = vpop.permute.xlu0 %489
    %491 = vset.pattern.permute.xlu0 1
    %492 = vperm.xlu0 %491, %v58
    %v493 = vpop.permute.xlu0 %492
    %494 = vset.pattern.permute.xlu0 1
    %495 = vperm.xlu0 %494, %v59
    %v496 = vpop.permute.xlu0 %495
    %497 = vset.pattern.permute.xlu0 1
    %498 = vperm.xlu0 %497, %v60
    %v499 = vpop.permute.xlu0 %498
    %500 = vset.pattern.permute.xlu0 1
    %501 = vperm.xlu0 %500, %v61
    %v502 = vpop.permute.xlu0 %501
    %503 = vset.pattern.permute.xlu0 1
    %504 = vperm.xlu0 %503, %v62
    %v505 = vpop.permute.xlu0 %504
    %506 = vset.pattern.permute.xlu0 1
    %507 = vperm.xlu0 %506, %v63
    %v508 = vpop.permute.xlu0 %507
    %509 = vset.pattern.permute.xlu0 1
    %510 = vperm.xlu0 %509, %v64
    %v511 = vpop.permute.xlu0 %510
    %512 = vset.pattern.permute.xlu0 1
    %513 = vperm.xlu0 %512, %v65
    %v514 = vpop.permute.xlu0 %513
    %515 = vset.pattern.permute.xlu0 1
    %516 = vperm.xlu0 %515, %v66
    %v517 = vpop.permute.xlu0 %516
    %vm518 = vcmp.eq.s32.totalorder %v68, %v424
    %vm519 = vcmp.eq.s32.totalorder %v69, %v424
    %vm520 = vcmp.eq.s32.totalorder %v68, %v427
    %vm521 = vcmp.eq.s32.totalorder %v69, %v427
    %vm522 = vcmp.eq.s32.totalorder %v68, %v430
    %vm523 = vcmp.eq.s32.totalorder %v69, %v430
    %vm524 = vcmp.eq.s32.totalorder %v68, %v433
    %vm525 = vcmp.eq.s32.totalorder %v69, %v433
    %vm526 = vcmp.eq.s32.totalorder %v68, %v436
    %vm527 = vcmp.eq.s32.totalorder %v69, %v436
    %vm528 = vcmp.eq.s32.totalorder %v68, %v439
    %vm529 = vcmp.eq.s32.totalorder %v69, %v439
    %vm530 = vcmp.eq.s32.totalorder %v68, %v442
    %vm531 = vcmp.eq.s32.totalorder %v69, %v442
    %vm532 = vcmp.eq.s32.totalorder %v68, %v445
    %vm533 = vcmp.eq.s32.totalorder %v69, %v445
    %vm534 = vcmp.eq.s32.totalorder %v68, %v448
    %vm535 = vcmp.eq.s32.totalorder %v69, %v448
    %vm536 = vcmp.eq.s32.totalorder %v68, %v451
    %vm537 = vcmp.eq.s32.totalorder %v69, %v451
    %vm538 = vcmp.eq.s32.totalorder %v68, %v454
    %vm539 = vcmp.eq.s32.totalorder %v69, %v454
    %vm540 = vcmp.eq.s32.totalorder %v68, %v457
    %vm541 = vcmp.eq.s32.totalorder %v69, %v457
    %vm542 = vcmp.eq.s32.totalorder %v68, %v460
    %vm543 = vcmp.eq.s32.totalorder %v69, %v460
    %vm544 = vcmp.eq.s32.totalorder %v68, %v463
    %vm545 = vcmp.eq.s32.totalorder %v69, %v463
    %vm546 = vcmp.eq.s32.totalorder %v68, %v466
    %vm547 = vcmp.eq.s32.totalorder %v69, %v466
    %vm548 = vcmp.eq.s32.totalorder %v68, %v469
    %vm549 = vcmp.eq.s32.totalorder %v69, %v469
    %vm550 = vcmp.eq.s32.totalorder %v68, %v472
    %vm551 = vcmp.eq.s32.totalorder %v69, %v472
    %vm552 = vcmp.eq.s32.totalorder %v68, %v475
    %vm553 = vcmp.eq.s32.totalorder %v69, %v475
    %vm554 = vcmp.eq.s32.totalorder %v68, %v478
    %vm555 = vcmp.eq.s32.totalorder %v69, %v478
    %vm556 = vcmp.eq.s32.totalorder %v68, %v481
    %vm557 = vcmp.eq.s32.totalorder %v69, %v481
    %vm558 = vcmp.eq.s32.totalorder %v68, %v484
    %vm559 = vcmp.eq.s32.totalorder %v69, %v484
    %vm560 = vcmp.eq.s32.totalorder %v68, %v487
    %vm561 = vcmp.eq.s32.totalorder %v69, %v487
    %vm562 = vcmp.eq.s32.totalorder %v68, %v490
    %vm563 = vcmp.eq.s32.totalorder %v69, %v490
    %vm564 = vcmp.eq.s32.totalorder %v68, %v493
    %vm565 = vcmp.eq.s32.totalorder %v69, %v493
    %vm566 = vcmp.eq.s32.totalorder %v68, %v496
    %vm567 = vcmp.eq.s32.totalorder %v69, %v496
    %vm568 = vcmp.eq.s32.totalorder %v68, %v499
    %vm569 = vcmp.eq.s32.totalorder %v69, %v499
    %vm570 = vcmp.eq.s32.totalorder %v68, %v502
    %vm571 = vcmp.eq.s32.totalorder %v69, %v502
    %vm572 = vcmp.eq.s32.totalorder %v68, %v505
    %vm573 = vcmp.eq.s32.totalorder %v69, %v505
    %vm574 = vcmp.eq.s32.totalorder %v68, %v508
    %vm575 = vcmp.eq.s32.totalorder %v69, %v508
    %vm576 = vcmp.eq.s32.totalorder %v68, %v511
    %vm577 = vcmp.eq.s32.totalorder %v69, %v511
    %vm578 = vcmp.eq.s32.totalorder %v68, %v514
    %vm579 = vcmp.eq.s32.totalorder %v69, %v514
    %vm580 = vcmp.eq.s32.totalorder %v68, %v517
    %vm581 = vcmp.eq.s32.totalorder %v69, %v517
    %v582 = vsel %vm518, 1, 0
    %v583 = vsel %vm519, 1, 0
    %v584 = vsel %vm520, 1, 0
    %v585 = vsel %vm521, 1, 0
    %v586 = vsel %vm522, 1, 0
    %v587 = vsel %vm523, 1, 0
    %v588 = vsel %vm524, 1, 0
    %v589 = vsel %vm525, 1, 0
    %v590 = vsel %vm526, 1, 0
    %v591 = vsel %vm527, 1, 0
    %v592 = vsel %vm528, 1, 0
    %v593 = vsel %vm529, 1, 0
    %v594 = vsel %vm530, 1, 0
    %v595 = vsel %vm531, 1, 0
    %v596 = vsel %vm532, 1, 0
    %v597 = vsel %vm533, 1, 0
    %v598 = vsel %vm534, 1, 0
    %v599 = vsel %vm535, 1, 0
    %v600 = vsel %vm536, 1, 0
    %v601 = vsel %vm537, 1, 0
    %v602 = vsel %vm538, 1, 0
    %v603 = vsel %vm539, 1, 0
    %v604 = vsel %vm540, 1, 0
    %v605 = vsel %vm541, 1, 0
    %v606 = vsel %vm542, 1, 0
    %v607 = vsel %vm543, 1, 0
    %v608 = vsel %vm544, 1, 0
    %v609 = vsel %vm545, 1, 0
    %v610 = vsel %vm546, 1, 0
    %v611 = vsel %vm547, 1, 0
    %v612 = vsel %vm548, 1, 0
    %v613 = vsel %vm549, 1, 0
    %v614 = vsel %vm550, 1, 0
    %v615 = vsel %vm551, 1, 0
    %v616 = vsel %vm552, 1, 0
    %v617 = vsel %vm553, 1, 0
    %v618 = vsel %vm554, 1, 0
    %v619 = vsel %vm555, 1, 0
    %v620 = vsel %vm556, 1, 0
    %v621 = vsel %vm557, 1, 0
    %v622 = vsel %vm558, 1, 0
    %v623 = vsel %vm559, 1, 0
    %v624 = vsel %vm560, 1, 0
    %v625 = vsel %vm561, 1, 0
    %v626 = vsel %vm562, 1, 0
    %v627 = vsel %vm563, 1, 0
    %v628 = vsel %vm564, 1, 0
    %v629 = vsel %vm565, 1, 0
    %v630 = vsel %vm566, 1, 0
    %v631 = vsel %vm567, 1, 0
    %v632 = vsel %vm568, 1, 0
    %v633 = vsel %vm569, 1, 0
    %v634 = vsel %vm570, 1, 0
    %v635 = vsel %vm571, 1, 0
    %v636 = vsel %vm572, 1, 0
    %v637 = vsel %vm573, 1, 0
    %v638 = vsel %vm574, 1, 0
    %v639 = vsel %vm575, 1, 0
    %v640 = vsel %vm576, 1, 0
    %v641 = vsel %vm577, 1, 0
    %v642 = vsel %vm578, 1, 0
    %v643 = vsel %vm579, 1, 0
    %v644 = vsel %vm580, 1, 0
    %v645 = vsel %vm581, 1, 0
    %v646 = vcvt.s32.f32 %v582
    %v647 = vcvt.s32.f32 %v583
    %v648 = vcvt.s32.f32 %v584
    %v649 = vcvt.s32.f32 %v585
    %v650 = vcvt.s32.f32 %v586
    %v651 = vcvt.s32.f32 %v587
    %v652 = vcvt.s32.f32 %v588
    %v653 = vcvt.s32.f32 %v589
    %v654 = vcvt.s32.f32 %v590
    %v655 = vcvt.s32.f32 %v591
    %v656 = vcvt.s32.f32 %v592
    %v657 = vcvt.s32.f32 %v593
    %v658 = vcvt.s32.f32 %v594
    %v659 = vcvt.s32.f32 %v595
    %v660 = vcvt.s32.f32 %v596
    %v661 = vcvt.s32.f32 %v597
    %v662 = vcvt.s32.f32 %v598
    %v663 = vcvt.s32.f32 %v599
    %v664 = vcvt.s32.f32 %v600
    %v665 = vcvt.s32.f32 %v601
    %v666 = vcvt.s32.f32 %v602
    %v667 = vcvt.s32.f32 %v603
    %v668 = vcvt.s32.f32 %v604
    %v669 = vcvt.s32.f32 %v605
    %v670 = vcvt.s32.f32 %v606
    %v671 = vcvt.s32.f32 %v607
    %v672 = vcvt.s32.f32 %v608
    %v673 = vcvt.s32.f32 %v609
    %v674 = vcvt.s32.f32 %v610
    %v675 = vcvt.s32.f32 %v611
    %v676 = vcvt.s32.f32 %v612
    %v677 = vcvt.s32.f32 %v613
    %v678 = vcvt.s32.f32 %v614
    %v679 = vcvt.s32.f32 %v615
    %v680 = vcvt.s32.f32 %v616
    %v681 = vcvt.s32.f32 %v617
    %v682 = vcvt.s32.f32 %v618
    %v683 = vcvt.s32.f32 %v619
    %v684 = vcvt.s32.f32 %v620
    %v685 = vcvt.s32.f32 %v621
    %v686 = vcvt.s32.f32 %v622
    %v687 = vcvt.s32.f32 %v623
    %v688 = vcvt.s32.f32 %v624
    %v689 = vcvt.s32.f32 %v625
    %v690 = vcvt.s32.f32 %v626
    %v691 = vcvt.s32.f32 %v627
    %v692 = vcvt.s32.f32 %v628
    %v693 = vcvt.s32.f32 %v629
    %v694 = vcvt.s32.f32 %v630
    %v695 = vcvt.s32.f32 %v631
    %v696 = vcvt.s32.f32 %v632
    %v697 = vcvt.s32.f32 %v633
    %v698 = vcvt.s32.f32 %v634
    %v699 = vcvt.s32.f32 %v635
    %v700 = vcvt.s32.f32 %v636
    %v701 = vcvt.s32.f32 %v637
    %v702 = vcvt.s32.f32 %v638
    %v703 = vcvt.s32.f32 %v639
    %v704 = vcvt.s32.f32 %v640
    %v705 = vcvt.s32.f32 %v641
    %v706 = vcvt.s32.f32 %v642
    %v707 = vcvt.s32.f32 %v643
    %v708 = vcvt.s32.f32 %v644
    %v709 = vcvt.s32.f32 %v645
    %v710 = vpack.c.bf16 %v648, %v646
    %v711 = vpack.c.bf16 %v649, %v647
    %v712 = vpack.c.bf16 %v652, %v650
    %v713 = vpack.c.bf16 %v653, %v651
    %v714 = vpack.c.bf16 %v656, %v654
    %v715 = vpack.c.bf16 %v657, %v655
    %v716 = vpack.c.bf16 %v660, %v658
    %v717 = vpack.c.bf16 %v661, %v659
    %v718 = vpack.c.bf16 %v664, %v662
    %v719 = vpack.c.bf16 %v665, %v663
    %v720 = vpack.c.bf16 %v668, %v666
    %v721 = vpack.c.bf16 %v669, %v667
    %v722 = vpack.c.bf16 %v672, %v670
    %v723 = vpack.c.bf16 %v673, %v671
    %v724 = vpack.c.bf16 %v676, %v674
    %v725 = vpack.c.bf16 %v677, %v675
    %v726 = vpack.c.bf16 %v680, %v678
    %v727 = vpack.c.bf16 %v681, %v679
    %v728 = vpack.c.bf16 %v684, %v682
    %v729 = vpack.c.bf16 %v685, %v683
    %v730 = vpack.c.bf16 %v688, %v686
    %v731 = vpack.c.bf16 %v689, %v687
    %v732 = vpack.c.bf16 %v692, %v690
    %v733 = vpack.c.bf16 %v693, %v691
    %v734 = vpack.c.bf16 %v696, %v694
    %v735 = vpack.c.bf16 %v697, %v695
    %v736 = vpack.c.bf16 %v700, %v698
    %v737 = vpack.c.bf16 %v701, %v699
    %v738 = vpack.c.bf16 %v704, %v702
    %v739 = vpack.c.bf16 %v705, %v703
    %v740 = vpack.c.bf16 %v708, %v706
    %v741 = vpack.c.bf16 %v709, %v707
    %s742 = scalar_lea.vmem [#allocation2], 128
    %v743 = vld [vmem:[%s742] sm:$0xf]
    %v744 = vld [vmem:[%s742 + $0x4] sm:$0xf]
    %v745 = vld [vmem:[%s742 + $0x8] sm:$0xf]
    %v746 = vld [vmem:[%s742 + $0xc] sm:$0xf]
    %v747 = vld [vmem:[%s742 + $0x10] sm:$0xf]
    %v748 = vld [vmem:[%s742 + $0x14] sm:$0xf]
    %v749 = vld [vmem:[%s742 + $0x18] sm:$0xf]
    %v750 = vld [vmem:[%s742 + $0x1c] sm:$0xf]
    %v751 = vld [vmem:[%s742 + $0x20] sm:$0xf]
    %v752 = vld [vmem:[%s742 + $0x24] sm:$0xf]
    %v753 = vld [vmem:[%s742 + $0x28] sm:$0xf]
    %v754 = vld [vmem:[%s742 + $0x2c] sm:$0xf]
    %v755 = vld [vmem:[%s742 + $0x30] sm:$0xf]
    %v756 = vld [vmem:[%s742 + $0x34] sm:$0xf]
    %v757 = vld [vmem:[%s742 + $0x38] sm:$0xf]
    %v758 = vld [vmem:[%s742 + $0x3c] sm:$0xf]
    %v759 = vld [vmem:[%s742 + $0x40] sm:$0xf]
    %v760 = vld [vmem:[%s742 + $0x44] sm:$0xf]
    %v761 = vld [vmem:[%s742 + $0x48] sm:$0xf]
    %v762 = vld [vmem:[%s742 + $0x4c] sm:$0xf]
    %v763 = vld [vmem:[%s742 + $0x50] sm:$0xf]
    %v764 = vld [vmem:[%s742 + $0x54] sm:$0xf]
    %v765 = vld [vmem:[%s742 + $0x58] sm:$0xf]
    %v766 = vld [vmem:[%s742 + $0x5c] sm:$0xf]
    %v767 = vld [vmem:[%s742 + $0x60] sm:$0xf]
    %v768 = vld [vmem:[%s742 + $0x64] sm:$0xf]
    %v769 = vld [vmem:[%s742 + $0x68] sm:$0xf]
    %v770 = vld [vmem:[%s742 + $0x6c] sm:$0xf]
    %v771 = vld [vmem:[%s742 + $0x70] sm:$0xf]
    %v772 = vld [vmem:[%s742 + $0x74] sm:$0xf]
    %v773 = vld [vmem:[%s742 + $0x78] sm:$0xf]
    %v774 = vld [vmem:[%s742 + $0x7c] sm:$0xf]
    %v807 = vunpack.c.l.b16 %v743
    %v808 = vunpack.c.l.b16 %v744
    %v809 = vunpack.c.l.b16 %v745
    %v810 = vunpack.c.l.b16 %v746
    %v811 = vunpack.c.l.b16 %v747
    %v812 = vunpack.c.l.b16 %v748
    %v813 = vunpack.c.l.b16 %v749
    %v814 = vunpack.c.l.b16 %v750
    %v815 = vunpack.c.l.b16 %v751
    %v816 = vunpack.c.l.b16 %v752
    %v817 = vunpack.c.l.b16 %v753
    %v818 = vunpack.c.l.b16 %v754
    %v819 = vunpack.c.l.b16 %v755
    %v820 = vunpack.c.l.b16 %v756
    %v821 = vunpack.c.l.b16 %v757
    %v822 = vunpack.c.l.b16 %v758
    %v823 = vunpack.c.l.b16 %v759
    %v824 = vunpack.c.l.b16 %v760
    %v825 = vunpack.c.l.b16 %v761
    %v826 = vunpack.c.l.b16 %v762
    %v827 = vunpack.c.l.b16 %v763
    %v828 = vunpack.c.l.b16 %v764
    %v829 = vunpack.c.l.b16 %v765
    %v830 = vunpack.c.l.b16 %v766
    %v831 = vunpack.c.l.b16 %v767
    %v832 = vunpack.c.l.b16 %v768
    %v833 = vunpack.c.l.b16 %v769
    %v834 = vunpack.c.l.b16 %v770
    %v835 = vunpack.c.l.b16 %v771
    %v836 = vunpack.c.l.b16 %v772
    %v837 = vunpack.c.l.b16 %v773
    %v838 = vunpack.c.l.b16 %v774
    %v839 = vpack.c.b16 %v808, %v807
    %v840 = vpack.c.b16 %v810, %v809
    %v841 = vpack.c.b16 %v812, %v811
    %v842 = vpack.c.b16 %v814, %v813
    %v843 = vpack.c.b16 %v816, %v815
    %v844 = vpack.c.b16 %v818, %v817
    %v845 = vpack.c.b16 %v820, %v819
    %v846 = vpack.c.b16 %v822, %v821
    %v847 = vpack.c.b16 %v824, %v823
    %v848 = vpack.c.b16 %v826, %v825
    %v849 = vpack.c.b16 %v828, %v827
    %v850 = vpack.c.b16 %v830, %v829
    %v851 = vpack.c.b16 %v832, %v831
    %v852 = vpack.c.b16 %v834, %v833
    %v853 = vpack.c.b16 %v836, %v835
    %v854 = vpack.c.b16 %v838, %v837
    %871 = vmatprep.subr.bf16.mxu0 0
    %872 = vmatpush1.bf16.msra.mxu0 %v846
    %873 = vmatprep.subr.bf16.mxu0 0
    %874 = vmatpush1.bf16.msra.mxu0 %v845
    %875 = vmatprep.subr.bf16.mxu0 0
    %876 = vmatpush1.bf16.msra.mxu0 %v844
    %877 = vmatprep.subr.bf16.mxu0 0
    %878 = vmatpush1.bf16.msra.mxu0 %v843
    %879 = vmatprep.subr.bf16.mxu0 0
    %880 = vmatpush1.bf16.msra.mxu0 %v842
    %881 = vmatprep.subr.bf16.mxu0 0
    %882 = vmatpush1.bf16.msra.mxu0 %v841
    %883 = vmatprep.subr.bf16.mxu0 0
    %884 = vmatpush1.bf16.msra.mxu0 %v840
    %885 = vmatprep.subr.bf16.mxu0 0
    %886 = vmatpush1.bf16.msra.mxu0 %v839
    %887 = vmatprep.subr.bf16.mxu0 0
    %888 = vmatpush2.bf16.msra.mxu0 %v854
    %889 = vmatprep.subr.bf16.mxu0 0
    %890 = vmatpush2.bf16.msra.mxu0 %v853
    %891 = vmatprep.subr.bf16.mxu0 0
    %892 = vmatpush2.bf16.msra.mxu0 %v852
    %893 = vmatprep.subr.bf16.mxu0 0
    %894 = vmatpush2.bf16.msra.mxu0 %v851
    %895 = vmatprep.subr.bf16.mxu0 0
    %896 = vmatpush2.bf16.msra.mxu0 %v850
    %897 = vmatprep.subr.bf16.mxu0 0
    %898 = vmatpush2.bf16.msra.mxu0 %v849
    %899 = vmatprep.subr.bf16.mxu0 0
    %900 = vmatpush2.bf16.msra.mxu0 %v848
    %901 = vmatprep.subr.bf16.mxu0 0
    %902 = vmatpush2.bf16.msra.mxu0 %v847
    %903 = vmatprep.mubr.bf16.mxu0 %v711
    %904 = vmatmul.mubr.bf16.gmra.mxu0 %v710
    %v905 = vpop.f32.mrf.mxu0
    %v906 = vadd.f32 0.0, %v905
    %v907 = vpop.f32.mrf.mxu0
    %v908 = vpop.f32.mrf.mxu0
    %v909 = vadd.f32 0.0, %v908
    %v910 = vpop.f32.mrf.mxu0
    %911 = vmatprep.mubr.bf16.mxu0 %v713
    %912 = vmatmul.mubr.bf16.gmra.mxu0 %v712
    %v913 = vpop.f32.mrf.mxu0
    %v914 = vadd.f32 0.0, %v913
    %v915 = vpop.f32.mrf.mxu0
    %v916 = vpop.f32.mrf.mxu0
    %v917 = vadd.f32 0.0, %v916
    %v918 = vpop.f32.mrf.mxu0
    %919 = vmatprep.mubr.bf16.mxu0 %v715
    %920 = vmatmul.mubr.bf16.gmra.mxu0 %v714
    %v921 = vpop.f32.mrf.mxu0
    %v922 = vadd.f32 0.0, %v921
    %v923 = vpop.f32.mrf.mxu0
    %v924 = vpop.f32.mrf.mxu0
    %v925 = vadd.f32 0.0, %v924
    %v926 = vpop.f32.mrf.mxu0
    %927 = vmatprep.mubr.bf16.mxu0 %v717
    %928 = vmatmul.mubr.bf16.gmra.mxu0 %v716
    %v929 = vpop.f32.mrf.mxu0
    %v930 = vadd.f32 0.0, %v929
    %v931 = vpop.f32.mrf.mxu0
    %v932 = vpop.f32.mrf.mxu0
    %v933 = vadd.f32 0.0, %v932
    %v934 = vpop.f32.mrf.mxu0
    %935 = vmatprep.mubr.bf16.mxu0 %v719
    %936 = vmatmul.mubr.bf16.gmra.mxu0 %v718
    %v937 = vpop.f32.mrf.mxu0
    %v938 = vadd.f32 0.0, %v937
    %v939 = vpop.f32.mrf.mxu0
    %v940 = vpop.f32.mrf.mxu0
    %v941 = vadd.f32 0.0, %v940
    %v942 = vpop.f32.mrf.mxu0
    %943 = vmatprep.mubr.bf16.mxu0 %v721
    %944 = vmatmul.mubr.bf16.gmra.mxu0 %v720
    %v945 = vpop.f32.mrf.mxu0
    %v946 = vadd.f32 0.0, %v945
    %v947 = vpop.f32.mrf.mxu0
    %v948 = vpop.f32.mrf.mxu0
    %v949 = vadd.f32 0.0, %v948
    %v950 = vpop.f32.mrf.mxu0
    %951 = vmatprep.mubr.bf16.mxu0 %v723
    %952 = vmatmul.mubr.bf16.gmra.mxu0 %v722
    %v953 = vpop.f32.mrf.mxu0
    %v954 = vadd.f32 0.0, %v953
    %v955 = vpop.f32.mrf.mxu0
    %v956 = vpop.f32.mrf.mxu0
    %v957 = vadd.f32 0.0, %v956
    %v958 = vpop.f32.mrf.mxu0
    %959 = vmatprep.mubr.bf16.mxu0 %v725
    %960 = vmatmul.mubr.bf16.gmra.mxu0 %v724
    %v961 = vpop.f32.mrf.mxu0
    %v962 = vadd.f32 0.0, %v961
    %v963 = vpop.f32.mrf.mxu0
    %v964 = vpop.f32.mrf.mxu0
    %v965 = vadd.f32 0.0, %v964
    %v966 = vpop.f32.mrf.mxu0
    %967 = vmatprep.mubr.bf16.mxu0 %v727
    %968 = vmatmul.mubr.bf16.gmra.mxu0 %v726
    %v969 = vpop.f32.mrf.mxu0
    %v970 = vadd.f32 0.0, %v969
    %v971 = vpop.f32.mrf.mxu0
    %v972 = vpop.f32.mrf.mxu0
    %v973 = vadd.f32 0.0, %v972
    %v974 = vpop.f32.mrf.mxu0
    %975 = vmatprep.mubr.bf16.mxu0 %v729
    %976 = vmatmul.mubr.bf16.gmra.mxu0 %v728
    %v977 = vpop.f32.mrf.mxu0
    %v978 = vadd.f32 0.0, %v977
    %v979 = vpop.f32.mrf.mxu0
    %v980 = vpop.f32.mrf.mxu0
    %v981 = vadd.f32 0.0, %v980
    %v982 = vpop.f32.mrf.mxu0
    %983 = vmatprep.mubr.bf16.mxu0 %v731
    %984 = vmatmul.mubr.bf16.gmra.mxu0 %v730
    %v985 = vpop.f32.mrf.mxu0
    %v986 = vadd.f32 0.0, %v985
    %v987 = vpop.f32.mrf.mxu0
    %v988 = vpop.f32.mrf.mxu0
    %v989 = vadd.f32 0.0, %v988
    %v990 = vpop.f32.mrf.mxu0
    %991 = vmatprep.mubr.bf16.mxu0 %v733
    %992 = vmatmul.mubr.bf16.gmra.mxu0 %v732
    %v993 = vpop.f32.mrf.mxu0
    %v994 = vadd.f32 0.0, %v993
    %v995 = vpop.f32.mrf.mxu0
    %v996 = vpop.f32.mrf.mxu0
    %v997 = vadd.f32 0.0, %v996
    %v998 = vpop.f32.mrf.mxu0
    %999 = vmatprep.mubr.bf16.mxu0 %v735
    %1000 = vmatmul.mubr.bf16.gmra.mxu0 %v734
    %v1001 = vpop.f32.mrf.mxu0
    %v1002 = vadd.f32 0.0, %v1001
    %v1003 = vpop.f32.mrf.mxu0
    %v1004 = vpop.f32.mrf.mxu0
    %v1005 = vadd.f32 0.0, %v1004
    %v1006 = vpop.f32.mrf.mxu0
    %1007 = vmatprep.mubr.bf16.mxu0 %v737
    %1008 = vmatmul.mubr.bf16.gmra.mxu0 %v736
    %v1009 = vpop.f32.mrf.mxu0
    %v1010 = vadd.f32 0.0, %v1009
    %v1011 = vpop.f32.mrf.mxu0
    %v1012 = vpop.f32.mrf.mxu0
    %v1013 = vadd.f32 0.0, %v1012
    %v1014 = vpop.f32.mrf.mxu0
    %1015 = vmatprep.mubr.bf16.mxu0 %v739
    %1016 = vmatmul.mubr.bf16.gmra.mxu0 %v738
    %v1017 = vpop.f32.mrf.mxu0
    %v1018 = vadd.f32 0.0, %v1017
    %v1019 = vpop.f32.mrf.mxu0
    %v1020 = vpop.f32.mrf.mxu0
    %v1021 = vadd.f32 0.0, %v1020
    %v1022 = vpop.f32.mrf.mxu0
    %1023 = vmatprep.mubr.bf16.mxu0 %v741
    %1024 = vmatmul.mubr.bf16.gmra.mxu0 %v740
    %v1025 = vpop.f32.mrf.mxu0
    %v1026 = vadd.f32 0.0, %v1025
    %v1027 = vpop.f32.mrf.mxu0
    %v1028 = vpop.f32.mrf.mxu0
    %v1029 = vadd.f32 0.0, %v1028
    %v1030 = vpop.f32.mrf.mxu0
    %1031 = vdwg.mxu0
    %v1064 = vunpack.c.l.b16 %v390
    %v1065 = vunpack.c.l.b16 %v391
    %v1066 = vunpack.c.l.b16 %v392
    %v1067 = vunpack.c.l.b16 %v393
    %v1068 = vunpack.c.l.b16 %v394
    %v1069 = vunpack.c.l.b16 %v395
    %v1070 = vunpack.c.l.b16 %v396
    %v1071 = vunpack.c.l.b16 %v397
    %v1072 = vunpack.c.l.b16 %v398
    %v1073 = vunpack.c.l.b16 %v399
    %v1074 = vunpack.c.l.b16 %v400
    %v1075 = vunpack.c.l.b16 %v401
    %v1076 = vunpack.c.l.b16 %v402
    %v1077 = vunpack.c.l.b16 %v403
    %v1078 = vunpack.c.l.b16 %v404
    %v1079 = vunpack.c.l.b16 %v405
    %v1080 = vunpack.c.l.b16 %v406
    %v1081 = vunpack.c.l.b16 %v407
    %v1082 = vunpack.c.l.b16 %v408
    %v1083 = vunpack.c.l.b16 %v409
    %v1084 = vunpack.c.l.b16 %v410
    %v1085 = vunpack.c.l.b16 %v411
    %v1086 = vunpack.c.l.b16 %v412
    %v1087 = vunpack.c.l.b16 %v413
    %v1088 = vunpack.c.l.b16 %v414
    %v1089 = vunpack.c.l.b16 %v415
    %v1090 = vunpack.c.l.b16 %v416
    %v1091 = vunpack.c.l.b16 %v417
    %v1092 = vunpack.c.l.b16 %v418
    %v1093 = vunpack.c.l.b16 %v419
    %v1094 = vunpack.c.l.b16 %v420
    %v1095 = vunpack.c.l.b16 %v421
    %v1096 = vpack.c.b16 %v1065, %v1064
    %v1097 = vpack.c.b16 %v1067, %v1066
    %v1098 = vpack.c.b16 %v1069, %v1068
    %v1099 = vpack.c.b16 %v1071, %v1070
    %v1100 = vpack.c.b16 %v1073, %v1072
    %v1101 = vpack.c.b16 %v1075, %v1074
    %v1102 = vpack.c.b16 %v1077, %v1076
    %v1103 = vpack.c.b16 %v1079, %v1078
    %v1104 = vpack.c.b16 %v1081, %v1080
    %v1105 = vpack.c.b16 %v1083, %v1082
    %v1106 = vpack.c.b16 %v1085, %v1084
    %v1107 = vpack.c.b16 %v1087, %v1086
    %v1108 = vpack.c.b16 %v1089, %v1088
    %v1109 = vpack.c.b16 %v1091, %v1090
    %v1110 = vpack.c.b16 %v1093, %v1092
    %v1111 = vpack.c.b16 %v1095, %v1094
    %1128 = vmatprep.subr.bf16.mxu0 0
    %1129 = vmatpush1.bf16.msra.mxu0 %v1103
    %1130 = vmatprep.subr.bf16.mxu0 0
    %1131 = vmatpush1.bf16.msra.mxu0 %v1102
    %1132 = vmatprep.subr.bf16.mxu0 0
    %1133 = vmatpush1.bf16.msra.mxu0 %v1101
    %1134 = vmatprep.subr.bf16.mxu0 0
    %1135 = vmatpush1.bf16.msra.mxu0 %v1100
    %1136 = vmatprep.subr.bf16.mxu0 0
    %1137 = vmatpush1.bf16.msra.mxu0 %v1099
    %1138 = vmatprep.subr.bf16.mxu0 0
    %1139 = vmatpush1.bf16.msra.mxu0 %v1098
    %1140 = vmatprep.subr.bf16.mxu0 0
    %1141 = vmatpush1.bf16.msra.mxu0 %v1097
    %1142 = vmatprep.subr.bf16.mxu0 0
    %1143 = vmatpush1.bf16.msra.mxu0 %v1096
    %1144 = vmatprep.subr.bf16.mxu0 0
    %1145 = vmatpush2.bf16.msra.mxu0 %v1111
    %1146 = vmatprep.subr.bf16.mxu0 0
    %1147 = vmatpush2.bf16.msra.mxu0 %v1110
    %1148 = vmatprep.subr.bf16.mxu0 0
    %1149 = vmatpush2.bf16.msra.mxu0 %v1109
    %1150 = vmatprep.subr.bf16.mxu0 0
    %1151 = vmatpush2.bf16.msra.mxu0 %v1108
    %1152 = vmatprep.subr.bf16.mxu0 0
    %1153 = vmatpush2.bf16.msra.mxu0 %v1107
    %1154 = vmatprep.subr.bf16.mxu0 0
    %1155 = vmatpush2.bf16.msra.mxu0 %v1106
    %1156 = vmatprep.subr.bf16.mxu0 0
    %1157 = vmatpush2.bf16.msra.mxu0 %v1105
    %1158 = vmatprep.subr.bf16.mxu0 0
    %1159 = vmatpush2.bf16.msra.mxu0 %v1104
    %1160 = vmatprep.mubr.bf16.mxu0 %v359
    %1161 = vmatmul.mubr.bf16.gmra.mxu0 %v358
    %v1162 = vpop.f32.mrf.mxu0
    %v1163 = vadd.f32 %v906, %v1162
    %v1164 = vpop.f32.mrf.mxu0
    %v1165 = vpop.f32.mrf.mxu0
    %v1166 = vadd.f32 %v909, %v1165
    %v1167 = vpop.f32.mrf.mxu0
    %1168 = vmatprep.mubr.bf16.mxu0 %v361
    %1169 = vmatmul.mubr.bf16.gmra.mxu0 %v360
    %v1170 = vpop.f32.mrf.mxu0
    %v1171 = vadd.f32 %v914, %v1170
    %v1172 = vpop.f32.mrf.mxu0
    %v1173 = vpop.f32.mrf.mxu0
    %v1174 = vadd.f32 %v917, %v1173
    %v1175 = vpop.f32.mrf.mxu0
    %1176 = vmatprep.mubr.bf16.mxu0 %v363
    %1177 = vmatmul.mubr.bf16.gmra.mxu0 %v362
    %v1178 = vpop.f32.mrf.mxu0
    %v1179 = vadd.f32 %v922, %v1178
    %v1180 = vpop.f32.mrf.mxu0
    %v1181 = vpop.f32.mrf.mxu0
    %v1182 = vadd.f32 %v925, %v1181
    %v1183 = vpop.f32.mrf.mxu0
    %1184 = vmatprep.mubr.bf16.mxu0 %v365
    %1185 = vmatmul.mubr.bf16.gmra.mxu0 %v364
    %v1186 = vpop.f32.mrf.mxu0
    %v1187 = vadd.f32 %v930, %v1186
    %v1188 = vpop.f32.mrf.mxu0
    %v1189 = vpop.f32.mrf.mxu0
    %v1190 = vadd.f32 %v933, %v1189
    %v1191 = vpop.f32.mrf.mxu0
    %1192 = vmatprep.mubr.bf16.mxu0 %v367
    %1193 = vmatmul.mubr.bf16.gmra.mxu0 %v366
    %v1194 = vpop.f32.mrf.mxu0
    %v1195 = vadd.f32 %v938, %v1194
    %v1196 = vpop.f32.mrf.mxu0
    %v1197 = vpop.f32.mrf.mxu0
    %v1198 = vadd.f32 %v941, %v1197
    %v1199 = vpop.f32.mrf.mxu0
    %1200 = vmatprep.mubr.bf16.mxu0 %v369
    %1201 = vmatmul.mubr.bf16.gmra.mxu0 %v368
    %v1202 = vpop.f32.mrf.mxu0
    %v1203 = vadd.f32 %v946, %v1202
    %v1204 = vpop.f32.mrf.mxu0
    %v1205 = vpop.f32.mrf.mxu0
    %v1206 = vadd.f32 %v949, %v1205
    %v1207 = vpop.f32.mrf.mxu0
    %1208 = vmatprep.mubr.bf16.mxu0 %v371
    %1209 = vmatmul.mubr.bf16.gmra.mxu0 %v370
    %v1210 = vpop.f32.mrf.mxu0
    %v1211 = vadd.f32 %v954, %v1210
    %v1212 = vpop.f32.mrf.mxu0
    %v1213 = vpop.f32.mrf.mxu0
    %v1214 = vadd.f32 %v957, %v1213
    %v1215 = vpop.f32.mrf.mxu0
    %1216 = vmatprep.mubr.bf16.mxu0 %v373
    %1217 = vmatmul.mubr.bf16.gmra.mxu0 %v372
    %v1218 = vpop.f32.mrf.mxu0
    %v1219 = vadd.f32 %v962, %v1218
    %v1220 = vpop.f32.mrf.mxu0
    %v1221 = vpop.f32.mrf.mxu0
    %v1222 = vadd.f32 %v965, %v1221
    %v1223 = vpop.f32.mrf.mxu0
    %1224 = vmatprep.mubr.bf16.mxu0 %v375
    %1225 = vmatmul.mubr.bf16.gmra.mxu0 %v374
    %v1226 = vpop.f32.mrf.mxu0
    %v1227 = vadd.f32 %v970, %v1226
    %v1228 = vpop.f32.mrf.mxu0
    %v1229 = vpop.f32.mrf.mxu0
    %v1230 = vadd.f32 %v973, %v1229
    %v1231 = vpop.f32.mrf.mxu0
    %1232 = vmatprep.mubr.bf16.mxu0 %v377
    %1233 = vmatmul.mubr.bf16.gmra.mxu0 %v376
    %v1234 = vpop.f32.mrf.mxu0
    %v1235 = vadd.f32 %v978, %v1234
    %v1236 = vpop.f32.mrf.mxu0
    %v1237 = vpop.f32.mrf.mxu0
    %v1238 = vadd.f32 %v981, %v1237
    %v1239 = vpop.f32.mrf.mxu0
    %1240 = vmatprep.mubr.bf16.mxu0 %v379
    %1241 = vmatmul.mubr.bf16.gmra.mxu0 %v378
    %v1242 = vpop.f32.mrf.mxu0
    %v1243 = vadd.f32 %v986, %v1242
    %v1244 = vpop.f32.mrf.mxu0
    %v1245 = vpop.f32.mrf.mxu0
    %v1246 = vadd.f32 %v989, %v1245
    %v1247 = vpop.f32.mrf.mxu0
    %1248 = vmatprep.mubr.bf16.mxu0 %v381
    %1249 = vmatmul.mubr.bf16.gmra.mxu0 %v380
    %v1250 = vpop.f32.mrf.mxu0
    %v1251 = vadd.f32 %v994, %v1250
    %v1252 = vpop.f32.mrf.mxu0
    %v1253 = vpop.f32.mrf.mxu0
    %v1254 = vadd.f32 %v997, %v1253
    %v1255 = vpop.f32.mrf.mxu0
    %1256 = vmatprep.mubr.bf16.mxu0 %v383
    %1257 = vmatmul.mubr.bf16.gmra.mxu0 %v382
    %v1258 = vpop.f32.mrf.mxu0
    %v1259 = vadd.f32 %v1002, %v1258
    %v1260 = vpop.f32.mrf.mxu0
    %v1261 = vpop.f32.mrf.mxu0
    %v1262 = vadd.f32 %v1005, %v1261
    %v1263 = vpop.f32.mrf.mxu0
    %1264 = vmatprep.mubr.bf16.mxu0 %v385
    %1265 = vmatmul.mubr.bf16.gmra.mxu0 %v384
    %v1266 = vpop.f32.mrf.mxu0
    %v1267 = vadd.f32 %v1010, %v1266
    %v1268 = vpop.f32.mrf.mxu0
    %v1269 = vpop.f32.mrf.mxu0
    %v1270 = vadd.f32 %v1013, %v1269
    %v1271 = vpop.f32.mrf.mxu0
    %1272 = vmatprep.mubr.bf16.mxu0 %v387
    %1273 = vmatmul.mubr.bf16.gmra.mxu0 %v386
    %v1274 = vpop.f32.mrf.mxu0
    %v1275 = vadd.f32 %v1018, %v1274
    %v1276 = vpop.f32.mrf.mxu0
    %v1277 = vpop.f32.mrf.mxu0
    %v1278 = vadd.f32 %v1021, %v1277
    %v1279 = vpop.f32.mrf.mxu0
    %1280 = vmatprep.mubr.bf16.mxu0 %v389
    %1281 = vmatmul.mubr.bf16.gmra.mxu0 %v388
    %v1282 = vpop.f32.mrf.mxu0
    %v1283 = vadd.f32 %v1026, %v1282
    %v1284 = vpop.f32.mrf.mxu0
    %v1285 = vpop.f32.mrf.mxu0
    %v1286 = vadd.f32 %v1029, %v1285
    %v1287 = vpop.f32.mrf.mxu0
    %1288 = vdwg.mxu0
    %1289 = vset.pattern.permute.xlu0 2
    %1290 = vperm.xlu0 %1289, %v35
    %v1291 = vpop.permute.xlu0 %1290
    %1292 = vset.pattern.permute.xlu0 2
    %1293 = vperm.xlu0 %1292, %v36
    %v1294 = vpop.permute.xlu0 %1293
    %1295 = vset.pattern.permute.xlu0 2
    %1296 = vperm.xlu0 %1295, %v37
    %v1297 = vpop.permute.xlu0 %1296
    %1298 = vset.pattern.permute.xlu0 2
    %1299 = vperm.xlu0 %1298, %v38
    %v1300 = vpop.permute.xlu0 %1299
    %1301 = vset.pattern.permute.xlu0 2
    %1302 = vperm.xlu0 %1301, %v39
    %v1303 = vpop.permute.xlu0 %1302
    %1304 = vset.pattern.permute.xlu0 2
    %1305 = vperm.xlu0 %1304, %v40
    %v1306 = vpop.permute.xlu0 %1305
    %1307 = vset.pattern.permute.xlu0 2
    %1308 = vperm.xlu0 %1307, %v41
    %v1309 = vpop.permute.xlu0 %1308
    %1310 = vset.pattern.permute.xlu0 2
    %1311 = vperm.xlu0 %1310, %v42
    %v1312 = vpop.permute.xlu0 %1311
    %1313 = vset.pattern.permute.xlu0 2
    %1314 = vperm.xlu0 %1313, %v43
    %v1315 = vpop.permute.xlu0 %1314
    %1316 = vset.pattern.permute.xlu0 2
    %1317 = vperm.xlu0 %1316, %v44
    %v1318 = vpop.permute.xlu0 %1317
    %1319 = vset.pattern.permute.xlu0 2
    %1320 = vperm.xlu0 %1319, %v45
    %v1321 = vpop.permute.xlu0 %1320
    %1322 = vset.pattern.permute.xlu0 2
    %1323 = vperm.xlu0 %1322, %v46
    %v1324 = vpop.permute.xlu0 %1323
    %1325 = vset.pattern.permute.xlu0 2
    %1326 = vperm.xlu0 %1325, %v47
    %v1327 = vpop.permute.xlu0 %1326
    %1328 = vset.pattern.permute.xlu0 2
    %1329 = vperm.xlu0 %1328, %v48
    %v1330 = vpop.permute.xlu0 %1329
    %1331 = vset.pattern.permute.xlu0 2
    %1332 = vperm.xlu0 %1331, %v49
    %v1333 = vpop.permute.xlu0 %1332
    %1334 = vset.pattern.permute.xlu0 2
    %1335 = vperm.xlu0 %1334, %v50
    %v1336 = vpop.permute.xlu0 %1335
    %1337 = vset.pattern.permute.xlu0 2
    %1338 = vperm.xlu0 %1337, %v51
    %v1339 = vpop.permute.xlu0 %1338
    %1340 = vset.pattern.permute.xlu0 2
    %1341 = vperm.xlu0 %1340, %v52
    %v1342 = vpop.permute.xlu0 %1341
    %1343 = vset.pattern.permute.xlu0 2
    %1344 = vperm.xlu0 %1343, %v53
    %v1345 = vpop.permute.xlu0 %1344
    %1346 = vset.pattern.permute.xlu0 2
    %1347 = vperm.xlu0 %1346, %v54
    %v1348 = vpop.permute.xlu0 %1347
    %1349 = vset.pattern.permute.xlu0 2
    %1350 = vperm.xlu0 %1349, %v55
    %v1351 = vpop.permute.xlu0 %1350
    %1352 = vset.pattern.permute.xlu0 2
    %1353 = vperm.xlu0 %1352, %v56
    %v1354 = vpop.permute.xlu0 %1353
    %1355 = vset.pattern.permute.xlu0 2
    %1356 = vperm.xlu0 %1355, %v57
    %v1357 = vpop.permute.xlu0 %1356
    %1358 = vset.pattern.permute.xlu0 2
    %1359 = vperm.xlu0 %1358, %v58
    %v1360 = vpop.permute.xlu0 %1359
    %1361 = vset.pattern.permute.xlu0 2
    %1362 = vperm.xlu0 %1361, %v59
    %v1363 = vpop.permute.xlu0 %1362
    %1364 = vset.pattern.permute.xlu0 2
    %1365 = vperm.xlu0 %1364, %v60
    %v1366 = vpop.permute.xlu0 %1365
    %1367 = vset.pattern.permute.xlu0 2
    %1368 = vperm.xlu0 %1367, %v61
    %v1369 = vpop.permute.xlu0 %1368
    %1370 = vset.pattern.permute.xlu0 2
    %1371 = vperm.xlu0 %1370, %v62
    %v1372 = vpop.permute.xlu0 %1371
    %1373 = vset.pattern.permute.xlu0 2
    %1374 = vperm.xlu0 %1373, %v63
    %v1375 = vpop.permute.xlu0 %1374
    %1376 = vset.pattern.permute.xlu0 2
    %1377 = vperm.xlu0 %1376, %v64
    %v1378 = vpop.permute.xlu0 %1377
    %1379 = vset.pattern.permute.xlu0 2
    %1380 = vperm.xlu0 %1379, %v65
    %v1381 = vpop.permute.xlu0 %1380
    %1382 = vset.pattern.permute.xlu0 2
    %1383 = vperm.xlu0 %1382, %v66
    %v1384 = vpop.permute.xlu0 %1383
    %vm1385 = vcmp.eq.s32.totalorder %v68, %v1291
    %vm1386 = vcmp.eq.s32.totalorder %v69, %v1291
    %vm1387 = vcmp.eq.s32.totalorder %v68, %v1294
    %vm1388 = vcmp.eq.s32.totalorder %v69, %v1294
    %vm1389 = vcmp.eq.s32.totalorder %v68, %v1297
    %vm1390 = vcmp.eq.s32.totalorder %v69, %v1297
    %vm1391 = vcmp.eq.s32.totalorder %v68, %v1300
    %vm1392 = vcmp.eq.s32.totalorder %v69, %v1300
    %vm1393 = vcmp.eq.s32.totalorder %v68, %v1303
    %vm1394 = vcmp.eq.s32.totalorder %v69, %v1303
    %vm1395 = vcmp.eq.s32.totalorder %v68, %v1306
    %vm1396 = vcmp.eq.s32.totalorder %v69, %v1306
    %vm1397 = vcmp.eq.s32.totalorder %v68, %v1309
    %vm1398 = vcmp.eq.s32.totalorder %v69, %v1309
    %vm1399 = vcmp.eq.s32.totalorder %v68, %v1312
    %vm1400 = vcmp.eq.s32.totalorder %v69, %v1312
    %vm1401 = vcmp.eq.s32.totalorder %v68, %v1315
    %vm1402 = vcmp.eq.s32.totalorder %v69, %v1315
    %vm1403 = vcmp.eq.s32.totalorder %v68, %v1318
    %vm1404 = vcmp.eq.s32.totalorder %v69, %v1318
    %vm1405 = vcmp.eq.s32.totalorder %v68, %v1321
    %vm1406 = vcmp.eq.s32.totalorder %v69, %v1321
    %vm1407 = vcmp.eq.s32.totalorder %v68, %v1324
    %vm1408 = vcmp.eq.s32.totalorder %v69, %v1324
    %vm1409 = vcmp.eq.s32.totalorder %v68, %v1327
    %vm1410 = vcmp.eq.s32.totalorder %v69, %v1327
    %vm1411 = vcmp.eq.s32.totalorder %v68, %v1330
    %vm1412 = vcmp.eq.s32.totalorder %v69, %v1330
    %vm1413 = vcmp.eq.s32.totalorder %v68, %v1333
    %vm1414 = vcmp.eq.s32.totalorder %v69, %v1333
    %vm1415 = vcmp.eq.s32.totalorder %v68, %v1336
    %vm1416 = vcmp.eq.s32.totalorder %v69, %v1336
    %vm1417 = vcmp.eq.s32.totalorder %v68, %v1339
    %vm1418 = vcmp.eq.s32.totalorder %v69, %v1339
    %vm1419 = vcmp.eq.s32.totalorder %v68, %v1342
    %vm1420 = vcmp.eq.s32.totalorder %v69, %v1342
    %vm1421 = vcmp.eq.s32.totalorder %v68, %v1345
    %vm1422 = vcmp.eq.s32.totalorder %v69, %v1345
    %vm1423 = vcmp.eq.s32.totalorder %v68, %v1348
    %vm1424 = vcmp.eq.s32.totalorder %v69, %v1348
    %vm1425 = vcmp.eq.s32.totalorder %v68, %v1351
    %vm1426 = vcmp.eq.s32.totalorder %v69, %v1351
    %vm1427 = vcmp.eq.s32.totalorder %v68, %v1354
    %vm1428 = vcmp.eq.s32.totalorder %v69, %v1354
    %vm1429 = vcmp.eq.s32.totalorder %v68, %v1357
    %vm1430 = vcmp.eq.s32.totalorder %v69, %v1357
    %vm1431 = vcmp.eq.s32.totalorder %v68, %v1360
    %vm1432 = vcmp.eq.s32.totalorder %v69, %v1360
    %vm1433 = vcmp.eq.s32.totalorder %v68, %v1363
    %vm1434 = vcmp.eq.s32.totalorder %v69, %v1363
    %vm1435 = vcmp.eq.s32.totalorder %v68, %v1366
    %vm1436 = vcmp.eq.s32.totalorder %v69, %v1366
    %vm1437 = vcmp.eq.s32.totalorder %v68, %v1369
    %vm1438 = vcmp.eq.s32.totalorder %v69, %v1369
    %vm1439 = vcmp.eq.s32.totalorder %v68, %v1372
    %vm1440 = vcmp.eq.s32.totalorder %v69, %v1372
    %vm1441 = vcmp.eq.s32.totalorder %v68, %v1375
    %vm1442 = vcmp.eq.s32.totalorder %v69, %v1375
    %vm1443 = vcmp.eq.s32.totalorder %v68, %v1378
    %vm1444 = vcmp.eq.s32.totalorder %v69, %v1378
    %vm1445 = vcmp.eq.s32.totalorder %v68, %v1381
    %vm1446 = vcmp.eq.s32.totalorder %v69, %v1381
    %vm1447 = vcmp.eq.s32.totalorder %v68, %v1384
    %vm1448 = vcmp.eq.s32.totalorder %v69, %v1384
    %v1449 = vsel %vm1385, 1, 0
    %v1450 = vsel %vm1386, 1, 0
    %v1451 = vsel %vm1387, 1, 0
    %v1452 = vsel %vm1388, 1, 0
    %v1453 = vsel %vm1389, 1, 0
    %v1454 = vsel %vm1390, 1, 0
    %v1455 = vsel %vm1391, 1, 0
    %v1456 = vsel %vm1392, 1, 0
    %v1457 = vsel %vm1393, 1, 0
    %v1458 = vsel %vm1394, 1, 0
    %v1459 = vsel %vm1395, 1, 0
    %v1460 = vsel %vm1396, 1, 0
    %v1461 = vsel %vm1397, 1, 0
    %v1462 = vsel %vm1398, 1, 0
    %v1463 = vsel %vm1399, 1, 0
    %v1464 = vsel %vm1400, 1, 0
    %v1465 = vsel %vm1401, 1, 0
    %v1466 = vsel %vm1402, 1, 0
    %v1467 = vsel %vm1403, 1, 0
    %v1468 = vsel %vm1404, 1, 0
    %v1469 = vsel %vm1405, 1, 0
    %v1470 = vsel %vm1406, 1, 0
    %v1471 = vsel %vm1407, 1, 0
    %v1472 = vsel %vm1408, 1, 0
    %v1473 = vsel %vm1409, 1, 0
    %v1474 = vsel %vm1410, 1, 0
    %v1475 = vsel %vm1411, 1, 0
    %v1476 = vsel %vm1412, 1, 0
    %v1477 = vsel %vm1413, 1, 0
    %v1478 = vsel %vm1414, 1, 0
    %v1479 = vsel %vm1415, 1, 0
    %v1480 = vsel %vm1416, 1, 0
    %v1481 = vsel %vm1417, 1, 0
    %v1482 = vsel %vm1418, 1, 0
    %v1483 = vsel %vm1419, 1, 0
    %v1484 = vsel %vm1420, 1, 0
    %v1485 = vsel %vm1421, 1, 0
    %v1486 = vsel %vm1422, 1, 0
    %v1487 = vsel %vm1423, 1, 0
    %v1488 = vsel %vm1424, 1, 0
    %v1489 = vsel %vm1425, 1, 0
    %v1490 = vsel %vm1426, 1, 0
    %v1491 = vsel %vm1427, 1, 0
    %v1492 = vsel %vm1428, 1, 0
    %v1493 = vsel %vm1429, 1, 0
    %v1494 = vsel %vm1430, 1, 0
    %v1495 = vsel %vm1431, 1, 0
    %v1496 = vsel %vm1432, 1, 0
    %v1497 = vsel %vm1433, 1, 0
    %v1498 = vsel %vm1434, 1, 0
    %v1499 = vsel %vm1435, 1, 0
    %v1500 = vsel %vm1436, 1, 0
    %v1501 = vsel %vm1437, 1, 0
    %v1502 = vsel %vm1438, 1, 0
    %v1503 = vsel %vm1439, 1, 0
    %v1504 = vsel %vm1440, 1, 0
    %v1505 = vsel %vm1441, 1, 0
    %v1506 = vsel %vm1442, 1, 0
    %v1507 = vsel %vm1443, 1, 0
    %v1508 = vsel %vm1444, 1, 0
    %v1509 = vsel %vm1445, 1, 0
    %v1510 = vsel %vm1446, 1, 0
    %v1511 = vsel %vm1447, 1, 0
    %v1512 = vsel %vm1448, 1, 0
    %v1513 = vcvt.s32.f32 %v1449
    %v1514 = vcvt.s32.f32 %v1450
    %v1515 = vcvt.s32.f32 %v1451
    %v1516 = vcvt.s32.f32 %v1452
    %v1517 = vcvt.s32.f32 %v1453
    %v1518 = vcvt.s32.f32 %v1454
    %v1519 = vcvt.s32.f32 %v1455
    %v1520 = vcvt.s32.f32 %v1456
    %v1521 = vcvt.s32.f32 %v1457
    %v1522 = vcvt.s32.f32 %v1458
    %v1523 = vcvt.s32.f32 %v1459
    %v1524 = vcvt.s32.f32 %v1460
    %v1525 = vcvt.s32.f32 %v1461
    %v1526 = vcvt.s32.f32 %v1462
    %v1527 = vcvt.s32.f32 %v1463
    %v1528 = vcvt.s32.f32 %v1464
    %v1529 = vcvt.s32.f32 %v1465
    %v1530 = vcvt.s32.f32 %v1466
    %v1531 = vcvt.s32.f32 %v1467
    %v1532 = vcvt.s32.f32 %v1468
    %v1533 = vcvt.s32.f32 %v1469
    %v1534 = vcvt.s32.f32 %v1470
    %v1535 = vcvt.s32.f32 %v1471
    %v1536 = vcvt.s32.f32 %v1472
    %v1537 = vcvt.s32.f32 %v1473
    %v1538 = vcvt.s32.f32 %v1474
    %v1539 = vcvt.s32.f32 %v1475
    %v1540 = vcvt.s32.f32 %v1476
    %v1541 = vcvt.s32.f32 %v1477
    %v1542 = vcvt.s32.f32 %v1478
    %v1543 = vcvt.s32.f32 %v1479
    %v1544 = vcvt.s32.f32 %v1480
    %v1545 = vcvt.s32.f32 %v1481
    %v1546 = vcvt.s32.f32 %v1482
    %v1547 = vcvt.s32.f32 %v1483
    %v1548 = vcvt.s32.f32 %v1484
    %v1549 = vcvt.s32.f32 %v1485
    %v1550 = vcvt.s32.f32 %v1486
    %v1551 = vcvt.s32.f32 %v1487
    %v1552 = vcvt.s32.f32 %v1488
    %v1553 = vcvt.s32.f32 %v1489
    %v1554 = vcvt.s32.f32 %v1490
    %v1555 = vcvt.s32.f32 %v1491
    %v1556 = vcvt.s32.f32 %v1492
    %v1557 = vcvt.s32.f32 %v1493
    %v1558 = vcvt.s32.f32 %v1494
    %v1559 = vcvt.s32.f32 %v1495
    %v1560 = vcvt.s32.f32 %v1496
    %v1561 = vcvt.s32.f32 %v1497
    %v1562 = vcvt.s32.f32 %v1498
    %v1563 = vcvt.s32.f32 %v1499
    %v1564 = vcvt.s32.f32 %v1500
    %v1565 = vcvt.s32.f32 %v1501
    %v1566 = vcvt.s32.f32 %v1502
    %v1567 = vcvt.s32.f32 %v1503
    %v1568 = vcvt.s32.f32 %v1504
    %v1569 = vcvt.s32.f32 %v1505
    %v1570 = vcvt.s32.f32 %v1506
    %v1571 = vcvt.s32.f32 %v1507
    %v1572 = vcvt.s32.f32 %v1508
    %v1573 = vcvt.s32.f32 %v1509
    %v1574 = vcvt.s32.f32 %v1510
    %v1575 = vcvt.s32.f32 %v1511
    %v1576 = vcvt.s32.f32 %v1512
    %v1577 = vpack.c.bf16 %v1515, %v1513
    %v1578 = vpack.c.bf16 %v1516, %v1514
    %v1579 = vpack.c.bf16 %v1519, %v1517
    %v1580 = vpack.c.bf16 %v1520, %v1518
    %v1581 = vpack.c.bf16 %v1523, %v1521
    %v1582 = vpack.c.bf16 %v1524, %v1522
    %v1583 = vpack.c.bf16 %v1527, %v1525
    %v1584 = vpack.c.bf16 %v1528, %v1526
    %v1585 = vpack.c.bf16 %v1531, %v1529
    %v1586 = vpack.c.bf16 %v1532, %v1530
    %v1587 = vpack.c.bf16 %v1535, %v1533
    %v1588 = vpack.c.bf16 %v1536, %v1534
    %v1589 = vpack.c.bf16 %v1539, %v1537
    %v1590 = vpack.c.bf16 %v1540, %v1538
    %v1591 = vpack.c.bf16 %v1543, %v1541
    %v1592 = vpack.c.bf16 %v1544, %v1542
    %v1593 = vpack.c.bf16 %v1547, %v1545
    %v1594 = vpack.c.bf16 %v1548, %v1546
    %v1595 = vpack.c.bf16 %v1551, %v1549
    %v1596 = vpack.c.bf16 %v1552, %v1550
    %v1597 = vpack.c.bf16 %v1555, %v1553
    %v1598 = vpack.c.bf16 %v1556, %v1554
    %v1599 = vpack.c.bf16 %v1559, %v1557
    %v1600 = vpack.c.bf16 %v1560, %v1558
    %v1601 = vpack.c.bf16 %v1563, %v1561
    %v1602 = vpack.c.bf16 %v1564, %v1562
    %v1603 = vpack.c.bf16 %v1567, %v1565
    %v1604 = vpack.c.bf16 %v1568, %v1566
    %v1605 = vpack.c.bf16 %v1571, %v1569
    %v1606 = vpack.c.bf16 %v1572, %v1570
    %v1607 = vpack.c.bf16 %v1575, %v1573
    %v1608 = vpack.c.bf16 %v1576, %v1574
    %s1609 = scalar_lea.vmem [#allocation2], 256
    %v1610 = vld [vmem:[%s1609] sm:$0xf]
    %v1611 = vld [vmem:[%s1609 + $0x4] sm:$0xf]
    %v1612 = vld [vmem:[%s1609 + $0x8] sm:$0xf]
    %v1613 = vld [vmem:[%s1609 + $0xc] sm:$0xf]
    %v1614 = vld [vmem:[%s1609 + $0x10] sm:$0xf]
    %v1615 = vld [vmem:[%s1609 + $0x14] sm:$0xf]
    %v1616 = vld [vmem:[%s1609 + $0x18] sm:$0xf]
    %v1617 = vld [vmem:[%s1609 + $0x1c] sm:$0xf]
    %v1618 = vld [vmem:[%s1609 + $0x20] sm:$0xf]
    %v1619 = vld [vmem:[%s1609 + $0x24] sm:$0xf]
    %v1620 = vld [vmem:[%s1609 + $0x28] sm:$0xf]
    %v1621 = vld [vmem:[%s1609 + $0x2c] sm:$0xf]
    %v1622 = vld [vmem:[%s1609 + $0x30] sm:$0xf]
    %v1623 = vld [vmem:[%s1609 + $0x34] sm:$0xf]
    %v1624 = vld [vmem:[%s1609 + $0x38] sm:$0xf]
    %v1625 = vld [vmem:[%s1609 + $0x3c] sm:$0xf]
    %v1626 = vld [vmem:[%s1609 + $0x40] sm:$0xf]
    %v1627 = vld [vmem:[%s1609 + $0x44] sm:$0xf]
    %v1628 = vld [vmem:[%s1609 + $0x48] sm:$0xf]
    %v1629 = vld [vmem:[%s1609 + $0x4c] sm:$0xf]
    %v1630 = vld [vmem:[%s1609 + $0x50] sm:$0xf]
    %v1631 = vld [vmem:[%s1609 + $0x54] sm:$0xf]
    %v1632 = vld [vmem:[%s1609 + $0x58] sm:$0xf]
    %v1633 = vld [vmem:[%s1609 + $0x5c] sm:$0xf]
    %v1634 = vld [vmem:[%s1609 + $0x60] sm:$0xf]
    %v1635 = vld [vmem:[%s1609 + $0x64] sm:$0xf]
    %v1636 = vld [vmem:[%s1609 + $0x68] sm:$0xf]
    %v1637 = vld [vmem:[%s1609 + $0x6c] sm:$0xf]
    %v1638 = vld [vmem:[%s1609 + $0x70] sm:$0xf]
    %v1639 = vld [vmem:[%s1609 + $0x74] sm:$0xf]
    %v1640 = vld [vmem:[%s1609 + $0x78] sm:$0xf]
    %v1641 = vld [vmem:[%s1609 + $0x7c] sm:$0xf]
    %v1674 = vunpack.c.l.b16 %v1610
    %v1675 = vunpack.c.l.b16 %v1611
    %v1676 = vunpack.c.l.b16 %v1612
    %v1677 = vunpack.c.l.b16 %v1613
    %v1678 = vunpack.c.l.b16 %v1614
    %v1679 = vunpack.c.l.b16 %v1615
    %v1680 = vunpack.c.l.b16 %v1616
    %v1681 = vunpack.c.l.b16 %v1617
    %v1682 = vunpack.c.l.b16 %v1618
    %v1683 = vunpack.c.l.b16 %v1619
    %v1684 = vunpack.c.l.b16 %v1620
    %v1685 = vunpack.c.l.b16 %v1621
    %v1686 = vunpack.c.l.b16 %v1622
    %v1687 = vunpack.c.l.b16 %v1623
    %v1688 = vunpack.c.l.b16 %v1624
    %v1689 = vunpack.c.l.b16 %v1625
    %v1690 = vunpack.c.l.b16 %v1626
    %v1691 = vunpack.c.l.b16 %v1627
    %v1692 = vunpack.c.l.b16 %v1628
    %v1693 = vunpack.c.l.b16 %v1629
    %v1694 = vunpack.c.l.b16 %v1630
    %v1695 = vunpack.c.l.b16 %v1631
    %v1696 = vunpack.c.l.b16 %v1632
    %v1697 = vunpack.c.l.b16 %v1633
    %v1698 = vunpack.c.l.b16 %v1634
    %v1699 = vunpack.c.l.b16 %v1635
    %v1700 = vunpack.c.l.b16 %v1636
    %v1701 = vunpack.c.l.b16 %v1637
    %v1702 = vunpack.c.l.b16 %v1638
    %v1703 = vunpack.c.l.b16 %v1639
    %v1704 = vunpack.c.l.b16 %v1640
    %v1705 = vunpack.c.l.b16 %v1641
    %v1706 = vpack.c.b16 %v1675, %v1674
    %v1707 = vpack.c.b16 %v1677, %v1676
    %v1708 = vpack.c.b16 %v1679, %v1678
    %v1709 = vpack.c.b16 %v1681, %v1680
    %v1710 = vpack.c.b16 %v1683, %v1682
    %v1711 = vpack.c.b16 %v1685, %v1684
    %v1712 = vpack.c.b16 %v1687, %v1686
    %v1713 = vpack.c.b16 %v1689, %v1688
    %v1714 = vpack.c.b16 %v1691, %v1690
    %v1715 = vpack.c.b16 %v1693, %v1692
    %v1716 = vpack.c.b16 %v1695, %v1694
    %v1717 = vpack.c.b16 %v1697, %v1696
    %v1718 = vpack.c.b16 %v1699, %v1698
    %v1719 = vpack.c.b16 %v1701, %v1700
    %v1720 = vpack.c.b16 %v1703, %v1702
    %v1721 = vpack.c.b16 %v1705, %v1704
    %1738 = vmatprep.subr.bf16.mxu0 0
    %1739 = vmatpush1.bf16.msra.mxu0 %v1713
    %1740 = vmatprep.subr.bf16.mxu0 0
    %1741 = vmatpush1.bf16.msra.mxu0 %v1712
    %1742 = vmatprep.subr.bf16.mxu0 0
    %1743 = vmatpush1.bf16.msra.mxu0 %v1711
    %1744 = vmatprep.subr.bf16.mxu0 0
    %1745 = vmatpush1.bf16.msra.mxu0 %v1710
    %1746 = vmatprep.subr.bf16.mxu0 0
    %1747 = vmatpush1.bf16.msra.mxu0 %v1709
    %1748 = vmatprep.subr.bf16.mxu0 0
    %1749 = vmatpush1.bf16.msra.mxu0 %v1708
    %1750 = vmatprep.subr.bf16.mxu0 0
    %1751 = vmatpush1.bf16.msra.mxu0 %v1707
    %1752 = vmatprep.subr.bf16.mxu0 0
    %1753 = vmatpush1.bf16.msra.mxu0 %v1706
    %1754 = vmatprep.subr.bf16.mxu0 0
    %1755 = vmatpush2.bf16.msra.mxu0 %v1721
    %1756 = vmatprep.subr.bf16.mxu0 0
    %1757 = vmatpush2.bf16.msra.mxu0 %v1720
    %1758 = vmatprep.subr.bf16.mxu0 0
    %1759 = vmatpush2.bf16.msra.mxu0 %v1719
    %1760 = vmatprep.subr.bf16.mxu0 0
    %1761 = vmatpush2.bf16.msra.mxu0 %v1718
    %1762 = vmatprep.subr.bf16.mxu0 0
    %1763 = vmatpush2.bf16.msra.mxu0 %v1717
    %1764 = vmatprep.subr.bf16.mxu0 0
    %1765 = vmatpush2.bf16.msra.mxu0 %v1716
    %1766 = vmatprep.subr.bf16.mxu0 0
    %1767 = vmatpush2.bf16.msra.mxu0 %v1715
    %1768 = vmatprep.subr.bf16.mxu0 0
    %1769 = vmatpush2.bf16.msra.mxu0 %v1714
    %1770 = vmatprep.mubr.bf16.mxu0 %v1578
    %1771 = vmatmul.mubr.bf16.gmra.mxu0 %v1577
    %v1772 = vpop.f32.mrf.mxu0
    %v1773 = vadd.f32 0.0, %v1772
    %v1774 = vpop.f32.mrf.mxu0
    %v1775 = vpop.f32.mrf.mxu0
    %v1776 = vadd.f32 0.0, %v1775
    %v1777 = vpop.f32.mrf.mxu0
    %1778 = vmatprep.mubr.bf16.mxu0 %v1580
    %1779 = vmatmul.mubr.bf16.gmra.mxu0 %v1579
    %v1780 = vpop.f32.mrf.mxu0
    %v1781 = vadd.f32 0.0, %v1780
    %v1782 = vpop.f32.mrf.mxu0
    %v1783 = vpop.f32.mrf.mxu0
    %v1784 = vadd.f32 0.0, %v1783
    %v1785 = vpop.f32.mrf.mxu0
    %1786 = vmatprep.mubr.bf16.mxu0 %v1582
    %1787 = vmatmul.mubr.bf16.gmra.mxu0 %v1581
    %v1788 = vpop.f32.mrf.mxu0
    %v1789 = vadd.f32 0.0, %v1788
    %v1790 = vpop.f32.mrf.mxu0
    %v1791 = vpop.f32.mrf.mxu0
    %v1792 = vadd.f32 0.0, %v1791
    %v1793 = vpop.f32.mrf.mxu0
    %1794 = vmatprep.mubr.bf16.mxu0 %v1584
    %1795 = vmatmul.mubr.bf16.gmra.mxu0 %v1583
    %v1796 = vpop.f32.mrf.mxu0
    %v1797 = vadd.f32 0.0, %v1796
    %v1798 = vpop.f32.mrf.mxu0
    %v1799 = vpop.f32.mrf.mxu0
    %v1800 = vadd.f32 0.0, %v1799
    %v1801 = vpop.f32.mrf.mxu0
    %1802 = vmatprep.mubr.bf16.mxu0 %v1586
    %1803 = vmatmul.mubr.bf16.gmra.mxu0 %v1585
    %v1804 = vpop.f32.mrf.mxu0
    %v1805 = vadd.f32 0.0, %v1804
    %v1806 = vpop.f32.mrf.mxu0
    %v1807 = vpop.f32.mrf.mxu0
    %v1808 = vadd.f32 0.0, %v1807
    %v1809 = vpop.f32.mrf.mxu0
    %1810 = vmatprep.mubr.bf16.mxu0 %v1588
    %1811 = vmatmul.mubr.bf16.gmra.mxu0 %v1587
    %v1812 = vpop.f32.mrf.mxu0
    %v1813 = vadd.f32 0.0, %v1812
    %v1814 = vpop.f32.mrf.mxu0
    %v1815 = vpop.f32.mrf.mxu0
    %v1816 = vadd.f32 0.0, %v1815
    %v1817 = vpop.f32.mrf.mxu0
    %1818 = vmatprep.mubr.bf16.mxu0 %v1590
    %1819 = vmatmul.mubr.bf16.gmra.mxu0 %v1589
    %v1820 = vpop.f32.mrf.mxu0
    %v1821 = vadd.f32 0.0, %v1820
    %v1822 = vpop.f32.mrf.mxu0
    %v1823 = vpop.f32.mrf.mxu0
    %v1824 = vadd.f32 0.0, %v1823
    %v1825 = vpop.f32.mrf.mxu0
    %1826 = vmatprep.mubr.bf16.mxu0 %v1592
    %1827 = vmatmul.mubr.bf16.gmra.mxu0 %v1591
    %v1828 = vpop.f32.mrf.mxu0
    %v1829 = vadd.f32 0.0, %v1828
    %v1830 = vpop.f32.mrf.mxu0
    %v1831 = vpop.f32.mrf.mxu0
    %v1832 = vadd.f32 0.0, %v1831
    %v1833 = vpop.f32.mrf.mxu0
    %1834 = vmatprep.mubr.bf16.mxu0 %v1594
    %1835 = vmatmul.mubr.bf16.gmra.mxu0 %v1593
    %v1836 = vpop.f32.mrf.mxu0
    %v1837 = vadd.f32 0.0, %v1836
    %v1838 = vpop.f32.mrf.mxu0
    %v1839 = vpop.f32.mrf.mxu0
    %v1840 = vadd.f32 0.0, %v1839
    %v1841 = vpop.f32.mrf.mxu0
    %1842 = vmatprep.mubr.bf16.mxu0 %v1596
    %1843 = vmatmul.mubr.bf16.gmra.mxu0 %v1595
    %v1844 = vpop.f32.mrf.mxu0
    %v1845 = vadd.f32 0.0, %v1844
    %v1846 = vpop.f32.mrf.mxu0
    %v1847 = vpop.f32.mrf.mxu0
    %v1848 = vadd.f32 0.0, %v1847
    %v1849 = vpop.f32.mrf.mxu0
    %1850 = vmatprep.mubr.bf16.mxu0 %v1598
    %1851 = vmatmul.mubr.bf16.gmra.mxu0 %v1597
    %v1852 = vpop.f32.mrf.mxu0
    %v1853 = vadd.f32 0.0, %v1852
    %v1854 = vpop.f32.mrf.mxu0
    %v1855 = vpop.f32.mrf.mxu0
    %v1856 = vadd.f32 0.0, %v1855
    %v1857 = vpop.f32.mrf.mxu0
    %1858 = vmatprep.mubr.bf16.mxu0 %v1600
    %1859 = vmatmul.mubr.bf16.gmra.mxu0 %v1599
    %v1860 = vpop.f32.mrf.mxu0
    %v1861 = vadd.f32 0.0, %v1860
    %v1862 = vpop.f32.mrf.mxu0
    %v1863 = vpop.f32.mrf.mxu0
    %v1864 = vadd.f32 0.0, %v1863
    %v1865 = vpop.f32.mrf.mxu0
    %1866 = vmatprep.mubr.bf16.mxu0 %v1602
    %1867 = vmatmul.mubr.bf16.gmra.mxu0 %v1601
    %v1868 = vpop.f32.mrf.mxu0
    %v1869 = vadd.f32 0.0, %v1868
    %v1870 = vpop.f32.mrf.mxu0
    %v1871 = vpop.f32.mrf.mxu0
    %v1872 = vadd.f32 0.0, %v1871
    %v1873 = vpop.f32.mrf.mxu0
    %1874 = vmatprep.mubr.bf16.mxu0 %v1604
    %1875 = vmatmul.mubr.bf16.gmra.mxu0 %v1603
    %v1876 = vpop.f32.mrf.mxu0
    %v1877 = vadd.f32 0.0, %v1876
    %v1878 = vpop.f32.mrf.mxu0
    %v1879 = vpop.f32.mrf.mxu0
    %v1880 = vadd.f32 0.0, %v1879
    %v1881 = vpop.f32.mrf.mxu0
    %1882 = vmatprep.mubr.bf16.mxu0 %v1606
    %1883 = vmatmul.mubr.bf16.gmra.mxu0 %v1605
    %v1884 = vpop.f32.mrf.mxu0
    %v1885 = vadd.f32 0.0, %v1884
    %v1886 = vpop.f32.mrf.mxu0
    %v1887 = vpop.f32.mrf.mxu0
    %v1888 = vadd.f32 0.0, %v1887
    %v1889 = vpop.f32.mrf.mxu0
    %1890 = vmatprep.mubr.bf16.mxu0 %v1608
    %1891 = vmatmul.mubr.bf16.gmra.mxu0 %v1607
    %v1892 = vpop.f32.mrf.mxu0
    %v1893 = vadd.f32 0.0, %v1892
    %v1894 = vpop.f32.mrf.mxu0
    %v1895 = vpop.f32.mrf.mxu0
    %v1896 = vadd.f32 0.0, %v1895
    %v1897 = vpop.f32.mrf.mxu0
    %1898 = vdwg.mxu0
    %v1899 = vadd.f32 %v1163, %v1773
    %v1900 = vadd.f32 %v1166, %v1776
    %v1901 = vadd.f32 %v1171, %v1781
    %v1902 = vadd.f32 %v1174, %v1784
    %v1903 = vadd.f32 %v1179, %v1789
    %v1904 = vadd.f32 %v1182, %v1792
    %v1905 = vadd.f32 %v1187, %v1797
    %v1906 = vadd.f32 %v1190, %v1800
    %v1907 = vadd.f32 %v1195, %v1805
    %v1908 = vadd.f32 %v1198, %v1808
    %v1909 = vadd.f32 %v1203, %v1813
    %v1910 = vadd.f32 %v1206, %v1816
    %v1911 = vadd.f32 %v1211, %v1821
    %v1912 = vadd.f32 %v1214, %v1824
    %v1913 = vadd.f32 %v1219, %v1829
    %v1914 = vadd.f32 %v1222, %v1832
    %v1915 = vadd.f32 %v1227, %v1837
    %v1916 = vadd.f32 %v1230, %v1840
    %v1917 = vadd.f32 %v1235, %v1845
    %v1918 = vadd.f32 %v1238, %v1848
    %v1919 = vadd.f32 %v1243, %v1853
    %v1920 = vadd.f32 %v1246, %v1856
    %v1921 = vadd.f32 %v1251, %v1861
    %v1922 = vadd.f32 %v1254, %v1864
    %v1923 = vadd.f32 %v1259, %v1869
    %v1924 = vadd.f32 %v1262, %v1872
    %v1925 = vadd.f32 %v1267, %v1877
    %v1926 = vadd.f32 %v1270, %v1880
    %v1927 = vadd.f32 %v1275, %v1885
    %v1928 = vadd.f32 %v1278, %v1888
    %v1929 = vadd.f32 %v1283, %v1893
    %v1930 = vadd.f32 %v1286, %v1896
    %1931 = vset.pattern.permute.xlu0 3
    %1932 = vperm.xlu0 %1931, %v35
    %v1933 = vpop.permute.xlu0 %1932
    %1934 = vset.pattern.permute.xlu0 3
    %1935 = vperm.xlu0 %1934, %v36
    %v1936 = vpop.permute.xlu0 %1935
    %1937 = vset.pattern.permute.xlu0 3
    %1938 = vperm.xlu0 %1937, %v37
    %v1939 = vpop.permute.xlu0 %1938
    %1940 = vset.pattern.permute.xlu0 3
    %1941 = vperm.xlu0 %1940, %v38
    %v1942 = vpop.permute.xlu0 %1941
    %1943 = vset.pattern.permute.xlu0 3
    %1944 = vperm.xlu0 %1943, %v39
    %v1945 = vpop.permute.xlu0 %1944
    %1946 = vset.pattern.permute.xlu0 3
    %1947 = vperm.xlu0 %1946, %v40
    %v1948 = vpop.permute.xlu0 %1947
    %1949 = vset.pattern.permute.xlu0 3
    %1950 = vperm.xlu0 %1949, %v41
    %v1951 = vpop.permute.xlu0 %1950
    %1952 = vset.pattern.permute.xlu0 3
    %1953 = vperm.xlu0 %1952, %v42
    %v1954 = vpop.permute.xlu0 %1953
    %1955 = vset.pattern.permute.xlu0 3
    %1956 = vperm.xlu0 %1955, %v43
    %v1957 = vpop.permute.xlu0 %1956
    %1958 = vset.pattern.permute.xlu0 3
    %1959 = vperm.xlu0 %1958, %v44
    %v1960 = vpop.permute.xlu0 %1959
    %1961 = vset.pattern.permute.xlu0 3
    %1962 = vperm.xlu0 %1961, %v45
    %v1963 = vpop.permute.xlu0 %1962
    %1964 = vset.pattern.permute.xlu0 3
    %1965 = vperm.xlu0 %1964, %v46
    %v1966 = vpop.permute.xlu0 %1965
    %1967 = vset.pattern.permute.xlu0 3
    %1968 = vperm.xlu0 %1967, %v47
    %v1969 = vpop.permute.xlu0 %1968
    %1970 = vset.pattern.permute.xlu0 3
    %1971 = vperm.xlu0 %1970, %v48
    %v1972 = vpop.permute.xlu0 %1971
    %1973 = vset.pattern.permute.xlu0 3
    %1974 = vperm.xlu0 %1973, %v49
    %v1975 = vpop.permute.xlu0 %1974
    %1976 = vset.pattern.permute.xlu0 3
    %1977 = vperm.xlu0 %1976, %v50
    %v1978 = vpop.permute.xlu0 %1977
    %1979 = vset.pattern.permute.xlu0 3
    %1980 = vperm.xlu0 %1979, %v51
    %v1981 = vpop.permute.xlu0 %1980
    %1982 = vset.pattern.permute.xlu0 3
    %1983 = vperm.xlu0 %1982, %v52
    %v1984 = vpop.permute.xlu0 %1983
    %1985 = vset.pattern.permute.xlu0 3
    %1986 = vperm.xlu0 %1985, %v53
    %v1987 = vpop.permute.xlu0 %1986
    %1988 = vset.pattern.permute.xlu0 3
    %1989 = vperm.xlu0 %1988, %v54
    %v1990 = vpop.permute.xlu0 %1989
    %1991 = vset.pattern.permute.xlu0 3
    %1992 = vperm.xlu0 %1991, %v55
    %v1993 = vpop.permute.xlu0 %1992
    %1994 = vset.pattern.permute.xlu0 3
    %1995 = vperm.xlu0 %1994, %v56
    %v1996 = vpop.permute.xlu0 %1995
    %1997 = vset.pattern.permute.xlu0 3
    %1998 = vperm.xlu0 %1997, %v57
    %v1999 = vpop.permute.xlu0 %1998
    %2000 = vset.pattern.permute.xlu0 3
    %2001 = vperm.xlu0 %2000, %v58
    %v2002 = vpop.permute.xlu0 %2001
    %2003 = vset.pattern.permute.xlu0 3
    %2004 = vperm.xlu0 %2003, %v59
    %v2005 = vpop.permute.xlu0 %2004
    %2006 = vset.pattern.permute.xlu0 3
    %2007 = vperm.xlu0 %2006, %v60
    %v2008 = vpop.permute.xlu0 %2007
    %2009 = vset.pattern.permute.xlu0 3
    %2010 = vperm.xlu0 %2009, %v61
    %v2011 = vpop.permute.xlu0 %2010
    %2012 = vset.pattern.permute.xlu0 3
    %2013 = vperm.xlu0 %2012, %v62
    %v2014 = vpop.permute.xlu0 %2013
    %2015 = vset.pattern.permute.xlu0 3
    %2016 = vperm.xlu0 %2015, %v63
    %v2017 = vpop.permute.xlu0 %2016
    %2018 = vset.pattern.permute.xlu0 3
    %2019 = vperm.xlu0 %2018, %v64
    %v2020 = vpop.permute.xlu0 %2019
    %2021 = vset.pattern.permute.xlu0 3
    %2022 = vperm.xlu0 %2021, %v65
    %v2023 = vpop.permute.xlu0 %2022
    %2024 = vset.pattern.permute.xlu0 3
    %2025 = vperm.xlu0 %2024, %v66
    %v2026 = vpop.permute.xlu0 %2025
    %vm2027 = vcmp.eq.s32.totalorder %v68, %v1933
    %vm2028 = vcmp.eq.s32.totalorder %v69, %v1933
    %vm2029 = vcmp.eq.s32.totalorder %v68, %v1936
    %vm2030 = vcmp.eq.s32.totalorder %v69, %v1936
    %vm2031 = vcmp.eq.s32.totalorder %v68, %v1939
    %vm2032 = vcmp.eq.s32.totalorder %v69, %v1939
    %vm2033 = vcmp.eq.s32.totalorder %v68, %v1942
    %vm2034 = vcmp.eq.s32.totalorder %v69, %v1942
    %vm2035 = vcmp.eq.s32.totalorder %v68, %v1945
    %vm2036 = vcmp.eq.s32.totalorder %v69, %v1945
    %vm2037 = vcmp.eq.s32.totalorder %v68, %v1948
    %vm2038 = vcmp.eq.s32.totalorder %v69, %v1948
    %vm2039 = vcmp.eq.s32.totalorder %v68, %v1951
    %vm2040 = vcmp.eq.s32.totalorder %v69, %v1951
    %vm2041 = vcmp.eq.s32.totalorder %v68, %v1954
    %vm2042 = vcmp.eq.s32.totalorder %v69, %v1954
    %vm2043 = vcmp.eq.s32.totalorder %v68, %v1957
    %vm2044 = vcmp.eq.s32.totalorder %v69, %v1957
    %vm2045 = vcmp.eq.s32.totalorder %v68, %v1960
    %vm2046 = vcmp.eq.s32.totalorder %v69, %v1960
    %vm2047 = vcmp.eq.s32.totalorder %v68, %v1963
    %vm2048 = vcmp.eq.s32.totalorder %v69, %v1963
    %vm2049 = vcmp.eq.s32.totalorder %v68, %v1966
    %vm2050 = vcmp.eq.s32.totalorder %v69, %v1966
    %vm2051 = vcmp.eq.s32.totalorder %v68, %v1969
    %vm2052 = vcmp.eq.s32.totalorder %v69, %v1969
    %vm2053 = vcmp.eq.s32.totalorder %v68, %v1972
    %vm2054 = vcmp.eq.s32.totalorder %v69, %v1972
    %vm2055 = vcmp.eq.s32.totalorder %v68, %v1975
    %vm2056 = vcmp.eq.s32.totalorder %v69, %v1975
    %vm2057 = vcmp.eq.s32.totalorder %v68, %v1978
    %vm2058 = vcmp.eq.s32.totalorder %v69, %v1978
    %vm2059 = vcmp.eq.s32.totalorder %v68, %v1981
    %vm2060 = vcmp.eq.s32.totalorder %v69, %v1981
    %vm2061 = vcmp.eq.s32.totalorder %v68, %v1984
    %vm2062 = vcmp.eq.s32.totalorder %v69, %v1984
    %vm2063 = vcmp.eq.s32.totalorder %v68, %v1987
    %vm2064 = vcmp.eq.s32.totalorder %v69, %v1987
    %vm2065 = vcmp.eq.s32.totalorder %v68, %v1990
    %vm2066 = vcmp.eq.s32.totalorder %v69, %v1990
    %vm2067 = vcmp.eq.s32.totalorder %v68, %v1993
    %vm2068 = vcmp.eq.s32.totalorder %v69, %v1993
    %vm2069 = vcmp.eq.s32.totalorder %v68, %v1996
    %vm2070 = vcmp.eq.s32.totalorder %v69, %v1996
    %vm2071 = vcmp.eq.s32.totalorder %v68, %v1999
    %vm2072 = vcmp.eq.s32.totalorder %v69, %v1999
    %vm2073 = vcmp.eq.s32.totalorder %v68, %v2002
    %vm2074 = vcmp.eq.s32.totalorder %v69, %v2002
    %vm2075 = vcmp.eq.s32.totalorder %v68, %v2005
    %vm2076 = vcmp.eq.s32.totalorder %v69, %v2005
    %vm2077 = vcmp.eq.s32.totalorder %v68, %v2008
    %vm2078 = vcmp.eq.s32.totalorder %v69, %v2008
    %vm2079 = vcmp.eq.s32.totalorder %v68, %v2011
    %vm2080 = vcmp.eq.s32.totalorder %v69, %v2011
    %vm2081 = vcmp.eq.s32.totalorder %v68, %v2014
    %vm2082 = vcmp.eq.s32.totalorder %v69, %v2014
    %vm2083 = vcmp.eq.s32.totalorder %v68, %v2017
    %vm2084 = vcmp.eq.s32.totalorder %v69, %v2017
    %vm2085 = vcmp.eq.s32.totalorder %v68, %v2020
    %vm2086 = vcmp.eq.s32.totalorder %v69, %v2020
    %vm2087 = vcmp.eq.s32.totalorder %v68, %v2023
    %vm2088 = vcmp.eq.s32.totalorder %v69, %v2023
    %vm2089 = vcmp.eq.s32.totalorder %v68, %v2026
    %vm2090 = vcmp.eq.s32.totalorder %v69, %v2026
    %v2091 = vsel %vm2027, 1, 0
    %v2092 = vsel %vm2028, 1, 0
    %v2093 = vsel %vm2029, 1, 0
    %v2094 = vsel %vm2030, 1, 0
    %v2095 = vsel %vm2031, 1, 0
    %v2096 = vsel %vm2032, 1, 0
    %v2097 = vsel %vm2033, 1, 0
    %v2098 = vsel %vm2034, 1, 0
    %v2099 = vsel %vm2035, 1, 0
    %v2100 = vsel %vm2036, 1, 0
    %v2101 = vsel %vm2037, 1, 0
    %v2102 = vsel %vm2038, 1, 0
    %v2103 = vsel %vm2039, 1, 0
    %v2104 = vsel %vm2040, 1, 0
    %v2105 = vsel %vm2041, 1, 0
    %v2106 = vsel %vm2042, 1, 0
    %v2107 = vsel %vm2043, 1, 0
    %v2108 = vsel %vm2044, 1, 0
    %v2109 = vsel %vm2045, 1, 0
    %v2110 = vsel %vm2046, 1, 0
    %v2111 = vsel %vm2047, 1, 0
    %v2112 = vsel %vm2048, 1, 0
    %v2113 = vsel %vm2049, 1, 0
    %v2114 = vsel %vm2050, 1, 0
    %v2115 = vsel %vm2051, 1, 0
    %v2116 = vsel %vm2052, 1, 0
    %v2117 = vsel %vm2053, 1, 0
    %v2118 = vsel %vm2054, 1, 0
    %v2119 = vsel %vm2055, 1, 0
    %v2120 = vsel %vm2056, 1, 0
    %v2121 = vsel %vm2057, 1, 0
    %v2122 = vsel %vm2058, 1, 0
    %v2123 = vsel %vm2059, 1, 0
    %v2124 = vsel %vm2060, 1, 0
    %v2125 = vsel %vm2061, 1, 0
    %v2126 = vsel %vm2062, 1, 0
    %v2127 = vsel %vm2063, 1, 0
    %v2128 = vsel %vm2064, 1, 0
    %v2129 = vsel %vm2065, 1, 0
    %v2130 = vsel %vm2066, 1, 0
    %v2131 = vsel %vm2067, 1, 0
    %v2132 = vsel %vm2068, 1, 0
    %v2133 = vsel %vm2069, 1, 0
    %v2134 = vsel %vm2070, 1, 0
    %v2135 = vsel %vm2071, 1, 0
    %v2136 = vsel %vm2072, 1, 0
    %v2137 = vsel %vm2073, 1, 0
    %v2138 = vsel %vm2074, 1, 0
    %v2139 = vsel %vm2075, 1, 0
    %v2140 = vsel %vm2076, 1, 0
    %v2141 = vsel %vm2077, 1, 0
    %v2142 = vsel %vm2078, 1, 0
    %v2143 = vsel %vm2079, 1, 0
    %v2144 = vsel %vm2080, 1, 0
    %v2145 = vsel %vm2081, 1, 0
    %v2146 = vsel %vm2082, 1, 0
    %v2147 = vsel %vm2083, 1, 0
    %v2148 = vsel %vm2084, 1, 0
    %v2149 = vsel %vm2085, 1, 0
    %v2150 = vsel %vm2086, 1, 0
    %v2151 = vsel %vm2087, 1, 0
    %v2152 = vsel %vm2088, 1, 0
    %v2153 = vsel %vm2089, 1, 0
    %v2154 = vsel %vm2090, 1, 0
    %v2155 = vcvt.s32.f32 %v2091
    %v2156 = vcvt.s32.f32 %v2092
    %v2157 = vcvt.s32.f32 %v2093
    %v2158 = vcvt.s32.f32 %v2094
    %v2159 = vcvt.s32.f32 %v2095
    %v2160 = vcvt.s32.f32 %v2096
    %v2161 = vcvt.s32.f32 %v2097
    %v2162 = vcvt.s32.f32 %v2098
    %v2163 = vcvt.s32.f32 %v2099
    %v2164 = vcvt.s32.f32 %v2100
    %v2165 = vcvt.s32.f32 %v2101
    %v2166 = vcvt.s32.f32 %v2102
    %v2167 = vcvt.s32.f32 %v2103
    %v2168 = vcvt.s32.f32 %v2104
    %v2169 = vcvt.s32.f32 %v2105
    %v2170 = vcvt.s32.f32 %v2106
    %v2171 = vcvt.s32.f32 %v2107
    %v2172 = vcvt.s32.f32 %v2108
    %v2173 = vcvt.s32.f32 %v2109
    %v2174 = vcvt.s32.f32 %v2110
    %v2175 = vcvt.s32.f32 %v2111
    %v2176 = vcvt.s32.f32 %v2112
    %v2177 = vcvt.s32.f32 %v2113
    %v2178 = vcvt.s32.f32 %v2114
    %v2179 = vcvt.s32.f32 %v2115
    %v2180 = vcvt.s32.f32 %v2116
    %v2181 = vcvt.s32.f32 %v2117
    %v2182 = vcvt.s32.f32 %v2118
    %v2183 = vcvt.s32.f32 %v2119
    %v2184 = vcvt.s32.f32 %v2120
    %v2185 = vcvt.s32.f32 %v2121
    %v2186 = vcvt.s32.f32 %v2122
    %v2187 = vcvt.s32.f32 %v2123
    %v2188 = vcvt.s32.f32 %v2124
    %v2189 = vcvt.s32.f32 %v2125
    %v2190 = vcvt.s32.f32 %v2126
    %v2191 = vcvt.s32.f32 %v2127
    %v2192 = vcvt.s32.f32 %v2128
    %v2193 = vcvt.s32.f32 %v2129
    %v2194 = vcvt.s32.f32 %v2130
    %v2195 = vcvt.s32.f32 %v2131
    %v2196 = vcvt.s32.f32 %v2132
    %v2197 = vcvt.s32.f32 %v2133
    %v2198 = vcvt.s32.f32 %v2134
    %v2199 = vcvt.s32.f32 %v2135
    %v2200 = vcvt.s32.f32 %v2136
    %v2201 = vcvt.s32.f32 %v2137
    %v2202 = vcvt.s32.f32 %v2138
    %v2203 = vcvt.s32.f32 %v2139
    %v2204 = vcvt.s32.f32 %v2140
    %v2205 = vcvt.s32.f32 %v2141
    %v2206 = vcvt.s32.f32 %v2142
    %v2207 = vcvt.s32.f32 %v2143
    %v2208 = vcvt.s32.f32 %v2144
    %v2209 = vcvt.s32.f32 %v2145
    %v2210 = vcvt.s32.f32 %v2146
    %v2211 = vcvt.s32.f32 %v2147
    %v2212 = vcvt.s32.f32 %v2148
    %v2213 = vcvt.s32.f32 %v2149
    %v2214 = vcvt.s32.f32 %v2150
    %v2215 = vcvt.s32.f32 %v2151
    %v2216 = vcvt.s32.f32 %v2152
    %v2217 = vcvt.s32.f32 %v2153
    %v2218 = vcvt.s32.f32 %v2154
    %v2219 = vpack.c.bf16 %v2157, %v2155
    %v2220 = vpack.c.bf16 %v2158, %v2156
    %v2221 = vpack.c.bf16 %v2161, %v2159
    %v2222 = vpack.c.bf16 %v2162, %v2160
    %v2223 = vpack.c.bf16 %v2165, %v2163
    %v2224 = vpack.c.bf16 %v2166, %v2164
    %v2225 = vpack.c.bf16 %v2169, %v2167
    %v2226 = vpack.c.bf16 %v2170, %v2168
    %v2227 = vpack.c.bf16 %v2173, %v2171
    %v2228 = vpack.c.bf16 %v2174, %v2172
    %v2229 = vpack.c.bf16 %v2177, %v2175
    %v2230 = vpack.c.bf16 %v2178, %v2176
    %v2231 = vpack.c.bf16 %v2181, %v2179
    %v2232 = vpack.c.bf16 %v2182, %v2180
    %v2233 = vpack.c.bf16 %v2185, %v2183
    %v2234 = vpack.c.bf16 %v2186, %v2184
    %v2235 = vpack.c.bf16 %v2189, %v2187
    %v2236 = vpack.c.bf16 %v2190, %v2188
    %v2237 = vpack.c.bf16 %v2193, %v2191
    %v2238 = vpack.c.bf16 %v2194, %v2192
    %v2239 = vpack.c.bf16 %v2197, %v2195
    %v2240 = vpack.c.bf16 %v2198, %v2196
    %v2241 = vpack.c.bf16 %v2201, %v2199
    %v2242 = vpack.c.bf16 %v2202, %v2200
    %v2243 = vpack.c.bf16 %v2205, %v2203
    %v2244 = vpack.c.bf16 %v2206, %v2204
    %v2245 = vpack.c.bf16 %v2209, %v2207
    %v2246 = vpack.c.bf16 %v2210, %v2208
    %v2247 = vpack.c.bf16 %v2213, %v2211
    %v2248 = vpack.c.bf16 %v2214, %v2212
    %v2249 = vpack.c.bf16 %v2217, %v2215
    %v2250 = vpack.c.bf16 %v2218, %v2216
    %s2251 = scalar_lea.vmem [#allocation2], 384
    %v2252 = vld [vmem:[%s2251] sm:$0xf]
    %v2253 = vld [vmem:[%s2251 + $0x4] sm:$0xf]
    %v2254 = vld [vmem:[%s2251 + $0x8] sm:$0xf]
    %v2255 = vld [vmem:[%s2251 + $0xc] sm:$0xf]
    %v2256 = vld [vmem:[%s2251 + $0x10] sm:$0xf]
    %v2257 = vld [vmem:[%s2251 + $0x14] sm:$0xf]
    %v2258 = vld [vmem:[%s2251 + $0x18] sm:$0xf]
    %v2259 = vld [vmem:[%s2251 + $0x1c] sm:$0xf]
    %v2260 = vld [vmem:[%s2251 + $0x20] sm:$0xf]
    %v2261 = vld [vmem:[%s2251 + $0x24] sm:$0xf]
    %v2262 = vld [vmem:[%s2251 + $0x28] sm:$0xf]
    %v2263 = vld [vmem:[%s2251 + $0x2c] sm:$0xf]
    %v2264 = vld [vmem:[%s2251 + $0x30] sm:$0xf]
    %v2265 = vld [vmem:[%s2251 + $0x34] sm:$0xf]
    %v2266 = vld [vmem:[%s2251 + $0x38] sm:$0xf]
    %v2267 = vld [vmem:[%s2251 + $0x3c] sm:$0xf]
    %v2268 = vld [vmem:[%s2251 + $0x40] sm:$0xf]
    %v2269 = vld [vmem:[%s2251 + $0x44] sm:$0xf]
    %v2270 = vld [vmem:[%s2251 + $0x48] sm:$0xf]
    %v2271 = vld [vmem:[%s2251 + $0x4c] sm:$0xf]
    %v2272 = vld [vmem:[%s2251 + $0x50] sm:$0xf]
    %v2273 = vld [vmem:[%s2251 + $0x54] sm:$0xf]
    %v2274 = vld [vmem:[%s2251 + $0x58] sm:$0xf]
    %v2275 = vld [vmem:[%s2251 + $0x5c] sm:$0xf]
    %v2276 = vld [vmem:[%s2251 + $0x60] sm:$0xf]
    %v2277 = vld [vmem:[%s2251 + $0x64] sm:$0xf]
    %v2278 = vld [vmem:[%s2251 + $0x68] sm:$0xf]
    %v2279 = vld [vmem:[%s2251 + $0x6c] sm:$0xf]
    %v2280 = vld [vmem:[%s2251 + $0x70] sm:$0xf]
    %v2281 = vld [vmem:[%s2251 + $0x74] sm:$0xf]
    %v2282 = vld [vmem:[%s2251 + $0x78] sm:$0xf]
    %v2283 = vld [vmem:[%s2251 + $0x7c] sm:$0xf]
    %v2316 = vunpack.c.l.b16 %v2252
    %v2317 = vunpack.c.l.b16 %v2253
    %v2318 = vunpack.c.l.b16 %v2254
    %v2319 = vunpack.c.l.b16 %v2255
    %v2320 = vunpack.c.l.b16 %v2256
    %v2321 = vunpack.c.l.b16 %v2257
    %v2322 = vunpack.c.l.b16 %v2258
    %v2323 = vunpack.c.l.b16 %v2259
    %v2324 = vunpack.c.l.b16 %v2260
    %v2325 = vunpack.c.l.b16 %v2261
    %v2326 = vunpack.c.l.b16 %v2262
    %v2327 = vunpack.c.l.b16 %v2263
    %v2328 = vunpack.c.l.b16 %v2264
    %v2329 = vunpack.c.l.b16 %v2265
    %v2330 = vunpack.c.l.b16 %v2266
    %v2331 = vunpack.c.l.b16 %v2267
    %v2332 = vunpack.c.l.b16 %v2268
    %v2333 = vunpack.c.l.b16 %v2269
    %v2334 = vunpack.c.l.b16 %v2270
    %v2335 = vunpack.c.l.b16 %v2271
    %v2336 = vunpack.c.l.b16 %v2272
    %v2337 = vunpack.c.l.b16 %v2273
    %v2338 = vunpack.c.l.b16 %v2274
    %v2339 = vunpack.c.l.b16 %v2275
    %v2340 = vunpack.c.l.b16 %v2276
    %v2341 = vunpack.c.l.b16 %v2277
    %v2342 = vunpack.c.l.b16 %v2278
    %v2343 = vunpack.c.l.b16 %v2279
    %v2344 = vunpack.c.l.b16 %v2280
    %v2345 = vunpack.c.l.b16 %v2281
    %v2346 = vunpack.c.l.b16 %v2282
    %v2347 = vunpack.c.l.b16 %v2283
    %v2348 = vpack.c.b16 %v2317, %v2316
    %v2349 = vpack.c.b16 %v2319, %v2318
    %v2350 = vpack.c.b16 %v2321, %v2320
    %v2351 = vpack.c.b16 %v2323, %v2322
    %v2352 = vpack.c.b16 %v2325, %v2324
    %v2353 = vpack.c.b16 %v2327, %v2326
    %v2354 = vpack.c.b16 %v2329, %v2328
    %v2355 = vpack.c.b16 %v2331, %v2330
    %v2356 = vpack.c.b16 %v2333, %v2332
    %v2357 = vpack.c.b16 %v2335, %v2334
    %v2358 = vpack.c.b16 %v2337, %v2336
    %v2359 = vpack.c.b16 %v2339, %v2338
    %v2360 = vpack.c.b16 %v2341, %v2340
    %v2361 = vpack.c.b16 %v2343, %v2342
    %v2362 = vpack.c.b16 %v2345, %v2344
    %v2363 = vpack.c.b16 %v2347, %v2346
    %2380 = vmatprep.subr.bf16.mxu0 0
    %2381 = vmatpush1.bf16.msra.mxu0 %v2355
    %2382 = vmatprep.subr.bf16.mxu0 0
    %2383 = vmatpush1.bf16.msra.mxu0 %v2354
    %2384 = vmatprep.subr.bf16.mxu0 0
    %2385 = vmatpush1.bf16.msra.mxu0 %v2353
    %2386 = vmatprep.subr.bf16.mxu0 0
    %2387 = vmatpush1.bf16.msra.mxu0 %v2352
    %2388 = vmatprep.subr.bf16.mxu0 0
    %2389 = vmatpush1.bf16.msra.mxu0 %v2351
    %2390 = vmatprep.subr.bf16.mxu0 0
    %2391 = vmatpush1.bf16.msra.mxu0 %v2350
    %2392 = vmatprep.subr.bf16.mxu0 0
    %2393 = vmatpush1.bf16.msra.mxu0 %v2349
    %2394 = vmatprep.subr.bf16.mxu0 0
    %2395 = vmatpush1.bf16.msra.mxu0 %v2348
    %2396 = vmatprep.subr.bf16.mxu0 0
    %2397 = vmatpush2.bf16.msra.mxu0 %v2363
    %2398 = vmatprep.subr.bf16.mxu0 0
    %2399 = vmatpush2.bf16.msra.mxu0 %v2362
    %2400 = vmatprep.subr.bf16.mxu0 0
    %2401 = vmatpush2.bf16.msra.mxu0 %v2361
    %2402 = vmatprep.subr.bf16.mxu0 0
    %2403 = vmatpush2.bf16.msra.mxu0 %v2360
    %2404 = vmatprep.subr.bf16.mxu0 0
    %2405 = vmatpush2.bf16.msra.mxu0 %v2359
    %2406 = vmatprep.subr.bf16.mxu0 0
    %2407 = vmatpush2.bf16.msra.mxu0 %v2358
    %2408 = vmatprep.subr.bf16.mxu0 0
    %2409 = vmatpush2.bf16.msra.mxu0 %v2357
    %2410 = vmatprep.subr.bf16.mxu0 0
    %2411 = vmatpush2.bf16.msra.mxu0 %v2356
    %2412 = vmatprep.mubr.bf16.mxu0 %v2220
    %2413 = vmatmul.mubr.bf16.gmra.mxu0 %v2219
    %v2414 = vpop.f32.mrf.mxu0
    %v2415 = vadd.f32 0.0, %v2414
    %v2416 = vpop.f32.mrf.mxu0
    %v2417 = vpop.f32.mrf.mxu0
    %v2418 = vadd.f32 0.0, %v2417
    %v2419 = vpop.f32.mrf.mxu0
    %2420 = vmatprep.mubr.bf16.mxu0 %v2222
    %2421 = vmatmul.mubr.bf16.gmra.mxu0 %v2221
    %v2422 = vpop.f32.mrf.mxu0
    %v2423 = vadd.f32 0.0, %v2422
    %v2424 = vpop.f32.mrf.mxu0
    %v2425 = vpop.f32.mrf.mxu0
    %v2426 = vadd.f32 0.0, %v2425
    %v2427 = vpop.f32.mrf.mxu0
    %2428 = vmatprep.mubr.bf16.mxu0 %v2224
    %2429 = vmatmul.mubr.bf16.gmra.mxu0 %v2223
    %v2430 = vpop.f32.mrf.mxu0
    %v2431 = vadd.f32 0.0, %v2430
    %v2432 = vpop.f32.mrf.mxu0
    %v2433 = vpop.f32.mrf.mxu0
    %v2434 = vadd.f32 0.0, %v2433
    %v2435 = vpop.f32.mrf.mxu0
    %2436 = vmatprep.mubr.bf16.mxu0 %v2226
    %2437 = vmatmul.mubr.bf16.gmra.mxu0 %v2225
    %v2438 = vpop.f32.mrf.mxu0
    %v2439 = vadd.f32 0.0, %v2438
    %v2440 = vpop.f32.mrf.mxu0
    %v2441 = vpop.f32.mrf.mxu0
    %v2442 = vadd.f32 0.0, %v2441
    %v2443 = vpop.f32.mrf.mxu0
    %2444 = vmatprep.mubr.bf16.mxu0 %v2228
    %2445 = vmatmul.mubr.bf16.gmra.mxu0 %v2227
    %v2446 = vpop.f32.mrf.mxu0
    %v2447 = vadd.f32 0.0, %v2446
    %v2448 = vpop.f32.mrf.mxu0
    %v2449 = vpop.f32.mrf.mxu0
    %v2450 = vadd.f32 0.0, %v2449
    %v2451 = vpop.f32.mrf.mxu0
    %2452 = vmatprep.mubr.bf16.mxu0 %v2230
    %2453 = vmatmul.mubr.bf16.gmra.mxu0 %v2229
    %v2454 = vpop.f32.mrf.mxu0
    %v2455 = vadd.f32 0.0, %v2454
    %v2456 = vpop.f32.mrf.mxu0
    %v2457 = vpop.f32.mrf.mxu0
    %v2458 = vadd.f32 0.0, %v2457
    %v2459 = vpop.f32.mrf.mxu0
    %2460 = vmatprep.mubr.bf16.mxu0 %v2232
    %2461 = vmatmul.mubr.bf16.gmra.mxu0 %v2231
    %v2462 = vpop.f32.mrf.mxu0
    %v2463 = vadd.f32 0.0, %v2462
    %v2464 = vpop.f32.mrf.mxu0
    %v2465 = vpop.f32.mrf.mxu0
    %v2466 = vadd.f32 0.0, %v2465
    %v2467 = vpop.f32.mrf.mxu0
    %2468 = vmatprep.mubr.bf16.mxu0 %v2234
    %2469 = vmatmul.mubr.bf16.gmra.mxu0 %v2233
    %v2470 = vpop.f32.mrf.mxu0
    %v2471 = vadd.f32 0.0, %v2470
    %v2472 = vpop.f32.mrf.mxu0
    %v2473 = vpop.f32.mrf.mxu0
    %v2474 = vadd.f32 0.0, %v2473
    %v2475 = vpop.f32.mrf.mxu0
    %2476 = vmatprep.mubr.bf16.mxu0 %v2236
    %2477 = vmatmul.mubr.bf16.gmra.mxu0 %v2235
    %v2478 = vpop.f32.mrf.mxu0
    %v2479 = vadd.f32 0.0, %v2478
    %v2480 = vpop.f32.mrf.mxu0
    %v2481 = vpop.f32.mrf.mxu0
    %v2482 = vadd.f32 0.0, %v2481
    %v2483 = vpop.f32.mrf.mxu0
    %2484 = vmatprep.mubr.bf16.mxu0 %v2238
    %2485 = vmatmul.mubr.bf16.gmra.mxu0 %v2237
    %v2486 = vpop.f32.mrf.mxu0
    %v2487 = vadd.f32 0.0, %v2486
    %v2488 = vpop.f32.mrf.mxu0
    %v2489 = vpop.f32.mrf.mxu0
    %v2490 = vadd.f32 0.0, %v2489
    %v2491 = vpop.f32.mrf.mxu0
    %2492 = vmatprep.mubr.bf16.mxu0 %v2240
    %2493 = vmatmul.mubr.bf16.gmra.mxu0 %v2239
    %v2494 = vpop.f32.mrf.mxu0
    %v2495 = vadd.f32 0.0, %v2494
    %v2496 = vpop.f32.mrf.mxu0
    %v2497 = vpop.f32.mrf.mxu0
    %v2498 = vadd.f32 0.0, %v2497
    %v2499 = vpop.f32.mrf.mxu0
    %2500 = vmatprep.mubr.bf16.mxu0 %v2242
    %2501 = vmatmul.mubr.bf16.gmra.mxu0 %v2241
    %v2502 = vpop.f32.mrf.mxu0
    %v2503 = vadd.f32 0.0, %v2502
    %v2504 = vpop.f32.mrf.mxu0
    %v2505 = vpop.f32.mrf.mxu0
    %v2506 = vadd.f32 0.0, %v2505
    %v2507 = vpop.f32.mrf.mxu0
    %2508 = vmatprep.mubr.bf16.mxu0 %v2244
    %2509 = vmatmul.mubr.bf16.gmra.mxu0 %v2243
    %v2510 = vpop.f32.mrf.mxu0
    %v2511 = vadd.f32 0.0, %v2510
    %v2512 = vpop.f32.mrf.mxu0
    %v2513 = vpop.f32.mrf.mxu0
    %v2514 = vadd.f32 0.0, %v2513
    %v2515 = vpop.f32.mrf.mxu0
    %2516 = vmatprep.mubr.bf16.mxu0 %v2246
    %2517 = vmatmul.mubr.bf16.gmra.mxu0 %v2245
    %v2518 = vpop.f32.mrf.mxu0
    %v2519 = vadd.f32 0.0, %v2518
    %v2520 = vpop.f32.mrf.mxu0
    %v2521 = vpop.f32.mrf.mxu0
    %v2522 = vadd.f32 0.0, %v2521
    %v2523 = vpop.f32.mrf.mxu0
    %2524 = vmatprep.mubr.bf16.mxu0 %v2248
    %2525 = vmatmul.mubr.bf16.gmra.mxu0 %v2247
    %v2526 = vpop.f32.mrf.mxu0
    %v2527 = vadd.f32 0.0, %v2526
    %v2528 = vpop.f32.mrf.mxu0
    %v2529 = vpop.f32.mrf.mxu0
    %v2530 = vadd.f32 0.0, %v2529
    %v2531 = vpop.f32.mrf.mxu0
    %2532 = vmatprep.mubr.bf16.mxu0 %v2250
    %2533 = vmatmul.mubr.bf16.gmra.mxu0 %v2249
    %v2534 = vpop.f32.mrf.mxu0
    %v2535 = vadd.f32 0.0, %v2534
    %v2536 = vpop.f32.mrf.mxu0
    %v2537 = vpop.f32.mrf.mxu0
    %v2538 = vadd.f32 0.0, %v2537
    %v2539 = vpop.f32.mrf.mxu0
    %2540 = vdwg.mxu0
    %v2541 = vadd.f32 %v1899, %v2415
    %v2542 = vadd.f32 %v1900, %v2418
    %v2543 = vadd.f32 %v1901, %v2423
    %v2544 = vadd.f32 %v1902, %v2426
    %v2545 = vadd.f32 %v1903, %v2431
    %v2546 = vadd.f32 %v1904, %v2434
    %v2547 = vadd.f32 %v1905, %v2439
    %v2548 = vadd.f32 %v1906, %v2442
    %v2549 = vadd.f32 %v1907, %v2447
    %v2550 = vadd.f32 %v1908, %v2450
    %v2551 = vadd.f32 %v1909, %v2455
    %v2552 = vadd.f32 %v1910, %v2458
    %v2553 = vadd.f32 %v1911, %v2463
    %v2554 = vadd.f32 %v1912, %v2466
    %v2555 = vadd.f32 %v1913, %v2471
    %v2556 = vadd.f32 %v1914, %v2474
    %v2557 = vadd.f32 %v1915, %v2479
    %v2558 = vadd.f32 %v1916, %v2482
    %v2559 = vadd.f32 %v1917, %v2487
    %v2560 = vadd.f32 %v1918, %v2490
    %v2561 = vadd.f32 %v1919, %v2495
    %v2562 = vadd.f32 %v1920, %v2498
    %v2563 = vadd.f32 %v1921, %v2503
    %v2564 = vadd.f32 %v1922, %v2506
    %v2565 = vadd.f32 %v1923, %v2511
    %v2566 = vadd.f32 %v1924, %v2514
    %v2567 = vadd.f32 %v1925, %v2519
    %v2568 = vadd.f32 %v1926, %v2522
    %v2569 = vadd.f32 %v1927, %v2527
    %v2570 = vadd.f32 %v1928, %v2530
    %v2571 = vadd.f32 %v1929, %v2535
    %v2572 = vadd.f32 %v1930, %v2538
    %v2573 = vld [vmem:[%s2] sm:$0x1]
    %v2575 = vlaneseq
    %v2576 = vshrl.u32 %v2575, 7
    %v2577 = vsub.s32 0, %v2576
    %v2578 = vrot.slane %v2573, %v2577
    %v2580 = vadd.f32 %v2541, %v2578
    %v2581 = vadd.f32 %v2542, %v2578
    %v2582 = vadd.f32 %v2543, %v2578
    %v2583 = vadd.f32 %v2544, %v2578
    %v2584 = vadd.f32 %v2545, %v2578
    %v2585 = vadd.f32 %v2546, %v2578
    %v2586 = vadd.f32 %v2547, %v2578
    %v2587 = vadd.f32 %v2548, %v2578
    %v2588 = vadd.f32 %v2549, %v2578
    %v2589 = vadd.f32 %v2550, %v2578
    %v2590 = vadd.f32 %v2551, %v2578
    %v2591 = vadd.f32 %v2552, %v2578
    %v2592 = vadd.f32 %v2553, %v2578
    %v2593 = vadd.f32 %v2554, %v2578
    %v2594 = vadd.f32 %v2555, %v2578
    %v2595 = vadd.f32 %v2556, %v2578
    %v2596 = vadd.f32 %v2557, %v2578
    %v2597 = vadd.f32 %v2558, %v2578
    %v2598 = vadd.f32 %v2559, %v2578
    %v2599 = vadd.f32 %v2560, %v2578
    %v2600 = vadd.f32 %v2561, %v2578
    %v2601 = vadd.f32 %v2562, %v2578
    %v2602 = vadd.f32 %v2563, %v2578
    %v2603 = vadd.f32 %v2564, %v2578
    %v2604 = vadd.f32 %v2565, %v2578
    %v2605 = vadd.f32 %v2566, %v2578
    %v2606 = vadd.f32 %v2567, %v2578
    %v2607 = vadd.f32 %v2568, %v2578
    %v2608 = vadd.f32 %v2569, %v2578
    %v2609 = vadd.f32 %v2570, %v2578
    %v2610 = vadd.f32 %v2571, %v2578
    %v2611 = vadd.f32 %v2572, %v2578
    %v2612 = vmax.f32 %v2580, 0.0
    %v2613 = vmax.f32 %v2581, 0.0
    %v2614 = vmax.f32 %v2582, 0.0
    %v2615 = vmax.f32 %v2583, 0.0
    %v2616 = vmax.f32 %v2584, 0.0
    %v2617 = vmax.f32 %v2585, 0.0
    %v2618 = vmax.f32 %v2586, 0.0
    %v2619 = vmax.f32 %v2587, 0.0
    %v2620 = vmax.f32 %v2588, 0.0
    %v2621 = vmax.f32 %v2589, 0.0
    %v2622 = vmax.f32 %v2590, 0.0
    %v2623 = vmax.f32 %v2591, 0.0
    %v2624 = vmax.f32 %v2592, 0.0
    %v2625 = vmax.f32 %v2593, 0.0
    %v2626 = vmax.f32 %v2594, 0.0
    %v2627 = vmax.f32 %v2595, 0.0
    %v2628 = vmax.f32 %v2596, 0.0
    %v2629 = vmax.f32 %v2597, 0.0
    %v2630 = vmax.f32 %v2598, 0.0
    %v2631 = vmax.f32 %v2599, 0.0
    %v2632 = vmax.f32 %v2600, 0.0
    %v2633 = vmax.f32 %v2601, 0.0
    %v2634 = vmax.f32 %v2602, 0.0
    %v2635 = vmax.f32 %v2603, 0.0
    %v2636 = vmax.f32 %v2604, 0.0
    %v2637 = vmax.f32 %v2605, 0.0
    %v2638 = vmax.f32 %v2606, 0.0
    %v2639 = vmax.f32 %v2607, 0.0
    %v2640 = vmax.f32 %v2608, 0.0
    %v2641 = vmax.f32 %v2609, 0.0
    %v2642 = vmax.f32 %v2610, 0.0
    %v2643 = vmax.f32 %v2611, 0.0
    %v2644 = vpack.c.bf16 %v2613, %v2612
    %v2645 = vpack.c.bf16 %v2615, %v2614
    %v2646 = vpack.c.bf16 %v2617, %v2616
    %v2647 = vpack.c.bf16 %v2619, %v2618
    %v2648 = vpack.c.bf16 %v2621, %v2620
    %v2649 = vpack.c.bf16 %v2623, %v2622
    %v2650 = vpack.c.bf16 %v2625, %v2624
    %v2651 = vpack.c.bf16 %v2627, %v2626
    %v2652 = vpack.c.bf16 %v2629, %v2628
    %v2653 = vpack.c.bf16 %v2631, %v2630
    %v2654 = vpack.c.bf16 %v2633, %v2632
    %v2655 = vpack.c.bf16 %v2635, %v2634
    %v2656 = vpack.c.bf16 %v2637, %v2636
    %v2657 = vpack.c.bf16 %v2639, %v2638
    %v2658 = vpack.c.bf16 %v2641, %v2640
    %v2659 = vpack.c.bf16 %v2643, %v2642
    %v2660 = vld [vmem:[%s3] sm:$0xff]
    %v2661 = vld [vmem:[%s3 + $0x8] sm:$0xff]
    %v2662 = vld [vmem:[%s3 + $0x10] sm:$0xff]
    %v2663 = vld [vmem:[%s3 + $0x18] sm:$0xff]
    %v2664 = vld [vmem:[%s3 + $0x20] sm:$0xff]
    %v2665 = vld [vmem:[%s3 + $0x28] sm:$0xff]
    %v2666 = vld [vmem:[%s3 + $0x30] sm:$0xff]
    %v2667 = vld [vmem:[%s3 + $0x38] sm:$0xff]
    %v2668 = vld [vmem:[%s3 + $0x40] sm:$0xff]
    %v2669 = vld [vmem:[%s3 + $0x48] sm:$0xff]
    %v2670 = vld [vmem:[%s3 + $0x50] sm:$0xff]
    %v2671 = vld [vmem:[%s3 + $0x58] sm:$0xff]
    %v2672 = vld [vmem:[%s3 + $0x60] sm:$0xff]
    %v2673 = vld [vmem:[%s3 + $0x68] sm:$0xff]
    %v2674 = vld [vmem:[%s3 + $0x70] sm:$0xff]
    %v2675 = vld [vmem:[%s3 + $0x78] sm:$0xff]
    %v2676 = vld [vmem:[%s4] sm:$0x3]
    %v2678 = vlaneseq
    %v2679 = vshrl.u32 %v2678, 7
    %v2680 = vsub.s32 0, %v2679
    %v2681 = vrot.slane %v2676, %v2680
    %v2682 = vlaneseq
    %v2683 = vshrl.u32 %v2682, 7
    %v2684 = vsub.s32 1, %v2683
    %v2685 = vrot.slane %v2676, %v2684
    %v2704 = vunpack.c.l.b16 %v2660
    %v2705 = vunpack.c.h.b16 %v2660
    %v2706 = vunpack.c.l.b16 %v2661
    %v2707 = vunpack.c.h.b16 %v2661
    %v2708 = vunpack.c.l.b16 %v2662
    %v2709 = vunpack.c.h.b16 %v2662
    %v2710 = vunpack.c.l.b16 %v2663
    %v2711 = vunpack.c.h.b16 %v2663
    %v2712 = vunpack.c.l.b16 %v2664
    %v2713 = vunpack.c.h.b16 %v2664
    %v2714 = vunpack.c.l.b16 %v2665
    %v2715 = vunpack.c.h.b16 %v2665
    %v2716 = vunpack.c.l.b16 %v2666
    %v2717 = vunpack.c.h.b16 %v2666
    %v2718 = vunpack.c.l.b16 %v2667
    %v2719 = vunpack.c.h.b16 %v2667
    %v2720 = vunpack.c.l.b16 %v2668
    %v2721 = vunpack.c.h.b16 %v2668
    %v2722 = vunpack.c.l.b16 %v2669
    %v2723 = vunpack.c.h.b16 %v2669
    %v2724 = vunpack.c.l.b16 %v2670
    %v2725 = vunpack.c.h.b16 %v2670
    %v2726 = vunpack.c.l.b16 %v2671
    %v2727 = vunpack.c.h.b16 %v2671
    %v2728 = vunpack.c.l.b16 %v2672
    %v2729 = vunpack.c.h.b16 %v2672
    %v2730 = vunpack.c.l.b16 %v2673
    %v2731 = vunpack.c.h.b16 %v2673
    %v2732 = vunpack.c.l.b16 %v2674
    %v2733 = vunpack.c.h.b16 %v2674
    %v2734 = vunpack.c.l.b16 %v2675
    %v2735 = vunpack.c.h.b16 %v2675
    %v2736 = vpack.c.b16 %v2706, %v2704
    %v2737 = vpack.c.b16 %v2707, %v2705
    %v2738 = vpack.c.b16 %v2710, %v2708
    %v2739 = vpack.c.b16 %v2711, %v2709
    %v2740 = vpack.c.b16 %v2714, %v2712
    %v2741 = vpack.c.b16 %v2715, %v2713
    %v2742 = vpack.c.b16 %v2718, %v2716
    %v2743 = vpack.c.b16 %v2719, %v2717
    %v2744 = vpack.c.b16 %v2722, %v2720
    %v2745 = vpack.c.b16 %v2723, %v2721
    %v2746 = vpack.c.b16 %v2726, %v2724
    %v2747 = vpack.c.b16 %v2727, %v2725
    %v2748 = vpack.c.b16 %v2730, %v2728
    %v2749 = vpack.c.b16 %v2731, %v2729
    %v2750 = vpack.c.b16 %v2734, %v2732
    %v2751 = vpack.c.b16 %v2735, %v2733
    %2768 = vmatprep.subr.bf16.mxu0 %v2751
    %2769 = vmatpush1.bf16.msra.mxu0 %v2750
    %2770 = vmatprep.subr.bf16.mxu0 %v2749
    %2771 = vmatpush1.bf16.msra.mxu0 %v2748
    %2772 = vmatprep.subr.bf16.mxu0 %v2747
    %2773 = vmatpush1.bf16.msra.mxu0 %v2746
    %2774 = vmatprep.subr.bf16.mxu0 %v2745
    %2775 = vmatpush1.bf16.msra.mxu0 %v2744
    %2776 = vmatprep.subr.bf16.mxu0 %v2743
    %2777 = vmatpush1.bf16.msra.mxu0 %v2742
    %2778 = vmatprep.subr.bf16.mxu0 %v2741
    %2779 = vmatpush1.bf16.msra.mxu0 %v2740
    %2780 = vmatprep.subr.bf16.mxu0 %v2739
    %2781 = vmatpush1.bf16.msra.mxu0 %v2738
    %2782 = vmatprep.subr.bf16.mxu0 %v2737
    %2783 = vmatpush1.bf16.msra.mxu0 %v2736
    %2784 = vmatprep.subr.bf16.mxu0 0
    %2785 = vmatpush2.bf16.msra.mxu0 0
    %2786 = vmatprep.subr.bf16.mxu0 0
    %2787 = vmatpush2.bf16.msra.mxu0 0
    %2788 = vmatprep.subr.bf16.mxu0 0
    %2789 = vmatpush2.bf16.msra.mxu0 0
    %2790 = vmatprep.subr.bf16.mxu0 0
    %2791 = vmatpush2.bf16.msra.mxu0 0
    %2792 = vmatprep.subr.bf16.mxu0 0
    %2793 = vmatpush2.bf16.msra.mxu0 0
    %2794 = vmatprep.subr.bf16.mxu0 0
    %2795 = vmatpush2.bf16.msra.mxu0 0
    %2796 = vmatprep.subr.bf16.mxu0 0
    %2797 = vmatpush2.bf16.msra.mxu0 0
    %2798 = vmatprep.subr.bf16.mxu0 0
    %2799 = vmatpush2.bf16.msra.mxu0 0
    %2800 = vmatprep.mubr.bf16.mxu0 0
    %2801 = vmatmul.mubr.bf16.gmra.mxu0 %v2644
    %v2802 = vpop.f32.mrf.mxu0
    %v2803 = vadd.f32 %v2681, %v2802
    %v2804 = vpop.f32.mrf.mxu0
    %v2805 = vadd.f32 %v2685, %v2804
    %v2806 = vpop.f32.mrf.mxu0
    %v2807 = vadd.f32 %v2681, %v2806
    %v2808 = vpop.f32.mrf.mxu0
    %v2809 = vadd.f32 %v2685, %v2808
    %2810 = vmatprep.mubr.bf16.mxu0 0
    %2811 = vmatmul.mubr.bf16.gmra.mxu0 %v2645
    %v2812 = vpop.f32.mrf.mxu0
    %v2813 = vadd.f32 %v2681, %v2812
    %v2814 = vpop.f32.mrf.mxu0
    %v2815 = vadd.f32 %v2685, %v2814
    %v2816 = vpop.f32.mrf.mxu0
    %v2817 = vadd.f32 %v2681, %v2816
    %v2818 = vpop.f32.mrf.mxu0
    %v2819 = vadd.f32 %v2685, %v2818
    %2820 = vmatprep.mubr.bf16.mxu0 0
    %2821 = vmatmul.mubr.bf16.gmra.mxu0 %v2646
    %v2822 = vpop.f32.mrf.mxu0
    %v2823 = vadd.f32 %v2681, %v2822
    %v2824 = vpop.f32.mrf.mxu0
    %v2825 = vadd.f32 %v2685, %v2824
    %v2826 = vpop.f32.mrf.mxu0
    %v2827 = vadd.f32 %v2681, %v2826
    %v2828 = vpop.f32.mrf.mxu0
    %v2829 = vadd.f32 %v2685, %v2828
    %2830 = vmatprep.mubr.bf16.mxu0 0
    %2831 = vmatmul.mubr.bf16.gmra.mxu0 %v2647
    %v2832 = vpop.f32.mrf.mxu0
    %v2833 = vadd.f32 %v2681, %v2832
    %v2834 = vpop.f32.mrf.mxu0
    %v2835 = vadd.f32 %v2685, %v2834
    %v2836 = vpop.f32.mrf.mxu0
    %v2837 = vadd.f32 %v2681, %v2836
    %v2838 = vpop.f32.mrf.mxu0
    %v2839 = vadd.f32 %v2685, %v2838
    %2840 = vmatprep.mubr.bf16.mxu0 0
    %2841 = vmatmul.mubr.bf16.gmra.mxu0 %v2648
    %v2842 = vpop.f32.mrf.mxu0
    %v2843 = vadd.f32 %v2681, %v2842
    %v2844 = vpop.f32.mrf.mxu0
    %v2845 = vadd.f32 %v2685, %v2844
    %v2846 = vpop.f32.mrf.mxu0
    %v2847 = vadd.f32 %v2681, %v2846
    %v2848 = vpop.f32.mrf.mxu0
    %v2849 = vadd.f32 %v2685, %v2848
    %2850 = vmatprep.mubr.bf16.mxu0 0
    %2851 = vmatmul.mubr.bf16.gmra.mxu0 %v2649
    %v2852 = vpop.f32.mrf.mxu0
    %v2853 = vadd.f32 %v2681, %v2852
    %v2854 = vpop.f32.mrf.mxu0
    %v2855 = vadd.f32 %v2685, %v2854
    %v2856 = vpop.f32.mrf.mxu0
    %v2857 = vadd.f32 %v2681, %v2856
    %v2858 = vpop.f32.mrf.mxu0
    %v2859 = vadd.f32 %v2685, %v2858
    %2860 = vmatprep.mubr.bf16.mxu0 0
    %2861 = vmatmul.mubr.bf16.gmra.mxu0 %v2650
    %v2862 = vpop.f32.mrf.mxu0
    %v2863 = vadd.f32 %v2681, %v2862
    %v2864 = vpop.f32.mrf.mxu0
    %v2865 = vadd.f32 %v2685, %v2864
    %v2866 = vpop.f32.mrf.mxu0
    %v2867 = vadd.f32 %v2681, %v2866
    %v2868 = vpop.f32.mrf.mxu0
    %v2869 = vadd.f32 %v2685, %v2868
    %2870 = vmatprep.mubr.bf16.mxu0 0
    %2871 = vmatmul.mubr.bf16.gmra.mxu0 %v2651
    %v2872 = vpop.f32.mrf.mxu0
    %v2873 = vadd.f32 %v2681, %v2872
    %v2874 = vpop.f32.mrf.mxu0
    %v2875 = vadd.f32 %v2685, %v2874
    %v2876 = vpop.f32.mrf.mxu0
    %v2877 = vadd.f32 %v2681, %v2876
    %v2878 = vpop.f32.mrf.mxu0
    %v2879 = vadd.f32 %v2685, %v2878
    %2880 = vmatprep.mubr.bf16.mxu0 0
    %2881 = vmatmul.mubr.bf16.gmra.mxu0 %v2652
    %v2882 = vpop.f32.mrf.mxu0
    %v2883 = vadd.f32 %v2681, %v2882
    %v2884 = vpop.f32.mrf.mxu0
    %v2885 = vadd.f32 %v2685, %v2884
    %v2886 = vpop.f32.mrf.mxu0
    %v2887 = vadd.f32 %v2681, %v2886
    %v2888 = vpop.f32.mrf.mxu0
    %v2889 = vadd.f32 %v2685, %v2888
    %2890 = vmatprep.mubr.bf16.mxu0 0
    %2891 = vmatmul.mubr.bf16.gmra.mxu0 %v2653
    %v2892 = vpop.f32.mrf.mxu0
    %v2893 = vadd.f32 %v2681, %v2892
    %v2894 = vpop.f32.mrf.mxu0
    %v2895 = vadd.f32 %v2685, %v2894
    %v2896 = vpop.f32.mrf.mxu0
    %v2897 = vadd.f32 %v2681, %v2896
    %v2898 = vpop.f32.mrf.mxu0
    %v2899 = vadd.f32 %v2685, %v2898
    %2900 = vmatprep.mubr.bf16.mxu0 0
    %2901 = vmatmul.mubr.bf16.gmra.mxu0 %v2654
    %v2902 = vpop.f32.mrf.mxu0
    %v2903 = vadd.f32 %v2681, %v2902
    %v2904 = vpop.f32.mrf.mxu0
    %v2905 = vadd.f32 %v2685, %v2904
    %v2906 = vpop.f32.mrf.mxu0
    %v2907 = vadd.f32 %v2681, %v2906
    %v2908 = vpop.f32.mrf.mxu0
    %v2909 = vadd.f32 %v2685, %v2908
    %2910 = vmatprep.mubr.bf16.mxu0 0
    %2911 = vmatmul.mubr.bf16.gmra.mxu0 %v2655
    %v2912 = vpop.f32.mrf.mxu0
    %v2913 = vadd.f32 %v2681, %v2912
    %v2914 = vpop.f32.mrf.mxu0
    %v2915 = vadd.f32 %v2685, %v2914
    %v2916 = vpop.f32.mrf.mxu0
    %v2917 = vadd.f32 %v2681, %v2916
    %v2918 = vpop.f32.mrf.mxu0
    %v2919 = vadd.f32 %v2685, %v2918
    %2920 = vmatprep.mubr.bf16.mxu0 0
    %2921 = vmatmul.mubr.bf16.gmra.mxu0 %v2656
    %v2922 = vpop.f32.mrf.mxu0
    %v2923 = vadd.f32 %v2681, %v2922
    %v2924 = vpop.f32.mrf.mxu0
    %v2925 = vadd.f32 %v2685, %v2924
    %v2926 = vpop.f32.mrf.mxu0
    %v2927 = vadd.f32 %v2681, %v2926
    %v2928 = vpop.f32.mrf.mxu0
    %v2929 = vadd.f32 %v2685, %v2928
    %2930 = vmatprep.mubr.bf16.mxu0 0
    %2931 = vmatmul.mubr.bf16.gmra.mxu0 %v2657
    %v2932 = vpop.f32.mrf.mxu0
    %v2933 = vadd.f32 %v2681, %v2932
    %v2934 = vpop.f32.mrf.mxu0
    %v2935 = vadd.f32 %v2685, %v2934
    %v2936 = vpop.f32.mrf.mxu0
    %v2937 = vadd.f32 %v2681, %v2936
    %v2938 = vpop.f32.mrf.mxu0
    %v2939 = vadd.f32 %v2685, %v2938
    %2940 = vmatprep.mubr.bf16.mxu0 0
    %2941 = vmatmul.mubr.bf16.gmra.mxu0 %v2658
    %v2942 = vpop.f32.mrf.mxu0
    %v2943 = vadd.f32 %v2681, %v2942
    %v2944 = vpop.f32.mrf.mxu0
    %v2945 = vadd.f32 %v2685, %v2944
    %v2946 = vpop.f32.mrf.mxu0
    %v2947 = vadd.f32 %v2681, %v2946
    %v2948 = vpop.f32.mrf.mxu0
    %v2949 = vadd.f32 %v2685, %v2948
    %2950 = vmatprep.mubr.bf16.mxu0 0
    %2951 = vmatmul.mubr.bf16.gmra.mxu0 %v2659
    %v2952 = vpop.f32.mrf.mxu0
    %v2953 = vadd.f32 %v2681, %v2952
    %v2954 = vpop.f32.mrf.mxu0
    %v2955 = vadd.f32 %v2685, %v2954
    %v2956 = vpop.f32.mrf.mxu0
    %v2957 = vadd.f32 %v2681, %v2956
    %v2958 = vpop.f32.mrf.mxu0
    %v2959 = vadd.f32 %v2685, %v2958
    %2960 = vdwg.mxu0
    %2961 = vst [vmem:[%s5] sm:$0xff] %v2803
    %2962 = vst [vmem:[%s5 + $0x8] sm:$0xff] %v2805
    %2963 = vst [vmem:[%s5 + $0x10] sm:$0xff] %v2807
    %2964 = vst [vmem:[%s5 + $0x18] sm:$0xff] %v2809
    %2965 = vst [vmem:[%s5 + $0x20] sm:$0xff] %v2813
    %2966 = vst [vmem:[%s5 + $0x28] sm:$0xff] %v2815
    %2967 = vst [vmem:[%s5 + $0x30] sm:$0xff] %v2817
    %2968 = vst [vmem:[%s5 + $0x38] sm:$0xff] %v2819
    %2969 = vst [vmem:[%s5 + $0x40] sm:$0xff] %v2823
    %2970 = vst [vmem:[%s5 + $0x48] sm:$0xff] %v2825
    %2971 = vst [vmem:[%s5 + $0x50] sm:$0xff] %v2827
    %2972 = vst [vmem:[%s5 + $0x58] sm:$0xff] %v2829
    %2973 = vst [vmem:[%s5 + $0x60] sm:$0xff] %v2833
    %2974 = vst [vmem:[%s5 + $0x68] sm:$0xff] %v2835
    %2975 = vst [vmem:[%s5 + $0x70] sm:$0xff] %v2837
    %2976 = vst [vmem:[%s5 + $0x78] sm:$0xff] %v2839
    %2977 = vst [vmem:[%s5 + $0x80] sm:$0xff] %v2843
    %2978 = vst [vmem:[%s5 + $0x88] sm:$0xff] %v2845
    %2979 = vst [vmem:[%s5 + $0x90] sm:$0xff] %v2847
    %2980 = vst [vmem:[%s5 + $0x98] sm:$0xff] %v2849
    %2981 = vst [vmem:[%s5 + $0xa0] sm:$0xff] %v2853
    %2982 = vst [vmem:[%s5 + $0xa8] sm:$0xff] %v2855
    %2983 = vst [vmem:[%s5 + $0xb0] sm:$0xff] %v2857
    %2984 = vst [vmem:[%s5 + $0xb8] sm:$0xff] %v2859
    %2985 = vst [vmem:[%s5 + $0xc0] sm:$0xff] %v2863
    %2986 = vst [vmem:[%s5 + $0xc8] sm:$0xff] %v2865
    %2987 = vst [vmem:[%s5 + $0xd0] sm:$0xff] %v2867
    %2988 = vst [vmem:[%s5 + $0xd8] sm:$0xff] %v2869
    %2989 = vst [vmem:[%s5 + $0xe0] sm:$0xff] %v2873
    %2990 = vst [vmem:[%s5 + $0xe8] sm:$0xff] %v2875
    %2991 = vst [vmem:[%s5 + $0xf0] sm:$0xff] %v2877
    %2992 = vst [vmem:[%s5 + $0xf8] sm:$0xff] %v2879
    %2993 = vst [vmem:[%s5 + $0x100] sm:$0xff] %v2883
    %2994 = vst [vmem:[%s5 + $0x108] sm:$0xff] %v2885
    %2995 = vst [vmem:[%s5 + $0x110] sm:$0xff] %v2887
    %2996 = vst [vmem:[%s5 + $0x118] sm:$0xff] %v2889
    %2997 = vst [vmem:[%s5 + $0x120] sm:$0xff] %v2893
    %2998 = vst [vmem:[%s5 + $0x128] sm:$0xff] %v2895
    %2999 = vst [vmem:[%s5 + $0x130] sm:$0xff] %v2897
    %3000 = vst [vmem:[%s5 + $0x138] sm:$0xff] %v2899
    %3001 = vst [vmem:[%s5 + $0x140] sm:$0xff] %v2903
    %3002 = vst [vmem:[%s5 + $0x148] sm:$0xff] %v2905
    %3003 = vst [vmem:[%s5 + $0x150] sm:$0xff] %v2907
    %3004 = vst [vmem:[%s5 + $0x158] sm:$0xff] %v2909
    %3005 = vst [vmem:[%s5 + $0x160] sm:$0xff] %v2913
    %3006 = vst [vmem:[%s5 + $0x168] sm:$0xff] %v2915
    %3007 = vst [vmem:[%s5 + $0x170] sm:$0xff] %v2917
    %3008 = vst [vmem:[%s5 + $0x178] sm:$0xff] %v2919
    %3009 = vst [vmem:[%s5 + $0x180] sm:$0xff] %v2923
    %3010 = vst [vmem:[%s5 + $0x188] sm:$0xff] %v2925
    %3011 = vst [vmem:[%s5 + $0x190] sm:$0xff] %v2927
    %3012 = vst [vmem:[%s5 + $0x198] sm:$0xff] %v2929
    %3013 = vst [vmem:[%s5 + $0x1a0] sm:$0xff] %v2933
    %3014 = vst [vmem:[%s5 + $0x1a8] sm:$0xff] %v2935
    %3015 = vst [vmem:[%s5 + $0x1b0] sm:$0xff] %v2937
    %3016 = vst [vmem:[%s5 + $0x1b8] sm:$0xff] %v2939
    %3017 = vst [vmem:[%s5 + $0x1c0] sm:$0xff] %v2943
    %3018 = vst [vmem:[%s5 + $0x1c8] sm:$0xff] %v2945
    %3019 = vst [vmem:[%s5 + $0x1d0] sm:$0xff] %v2947
    %3020 = vst [vmem:[%s5 + $0x1d8] sm:$0xff] %v2949
    %3021 = vst [vmem:[%s5 + $0x1e0] sm:$0xff] %v2953
    %3022 = vst [vmem:[%s5 + $0x1e8] sm:$0xff] %v2955
    %3023 = vst [vmem:[%s5 + $0x1f0] sm:$0xff] %v2957
    %3024 = vst [vmem:[%s5 + $0x1f8] sm:$0xff] %v2959
    // Predicated region
    $region26: #{base_model_forward.1} parent=1 // pred_check
      _
    $region27: #{base_model_forward.1} parent=1 // pred_check_branch
      %3026 = sbr.rel (0) target = $region29
    $region28: #{base_model_forward.1} parent=1 // pred_region
      _
    $region29: #{base_model_forward.1} parent=1 // pred_fallthru
      _
    // Predicated region
    $region30: #{base_model_forward.1} parent=1 // pred_check
      _
    $region31: #{base_model_forward.1} parent=1 // pred_check_branch
      %3028 = sbr.rel (0) target = $region33
    $region32: #{base_model_forward.1} parent=1 // pred_region
      _
    $region33: #{base_model_forward.1} parent=1 // pred_fallthru
      _
    %3029 = vsyncpa [#allocation3], 1

</llo_original>
